<compile_context>
chip_gen: v7x
topology: tpu7x:2x2x1
jax: 0.10.0
libtpu: 0.0.40
codegen_flags: <defaults>
</compile_context>

<pallas_src>
import functools

import jax
import jax.numpy as jnp
from jax.experimental import pallas as pl
from jax.experimental.pallas import tpu as pltpu


def _round_up(x, m):
    return (x + m - 1) // m * m


def _vmem_cap_bytes():
    """Physical per-core VMEM minus ~8 MiB headroom (64 MiB on v7x, 128 MiB on v5e/v6e)."""
    try:
        phys = int(pltpu.get_tpu_info().vmem_capacity_bytes)
    except Exception:
        phys = 64 << 20                      # conservative fallback: assume v7x
    return max(16 << 20, phys - (8 << 20))


def _pick_tile(total, max_tile, quantum):
    """Largest multiple of `quantum` <= max_tile that divides `total`."""
    assert total % quantum == 0, (total, quantum)
    t = min(total, max_tile)
    t = max(quantum, (t // quantum) * quantum)
    while total % t:
        t -= quantum
    return t


def _row_quantum(dtype):
    """Sublane packing quantum: 8 rows for 4-byte, 16 for 2-byte dtypes."""
    return 8 * (4 // jnp.dtype(dtype).itemsize)


# ----------------------- fused TCN block-stack kernel ----------------------- #

def _tcn_stack_kernel(x_ref, w1_ref, b1_ref, w2_ref, b2_ref, wd_ref, bd_ref,
                      o_ref, buf_a, buf_b, *, K, dilations, has_ds, Lp, P, chunk):
    """One batch row: run every DynamicTemporalBlock with the activation resident
    in VMEM. buf_a / buf_b are (rows, Cp) ping-pong buffers whose first P rows
    are the (sublane-aligned) zero causal left pad (Conv1d padding + Chomp1d)."""
    Cp = buf_a.shape[1]
    cdt = buf_a.dtype

    # Zero the aligned causal pad region. Layer outputs only ever write rows
    # [P, P+Lp), so the pad stays exactly zero for every layer.
    zpad = jnp.zeros((P, Cp), cdt)
    buf_a[0:P, :] = zpad
    buf_b[0:P, :] = zpad

    # Load the (channel-padded) embedded input into the resident buffer (aligned).
    buf_a[P:P + Lp, :] = x_ref[0]

    def conv_chunk(src, t0, tl, d, w_ref, blk):
        # K accumulated matmuls with static weight slices (f32 accumulation).
        # No im2col concatenate: the concat temp is pure vld/vst + vreg pressure
        # on v5e (128-deep MXU) and whenever per-tap contraction >= MXU depth.
        acc = None
        for k in range(K):
            r0 = P + t0 - (K - 1 - k) * d
            tap = src[r0:r0 + tl, :]
            part = jnp.dot(tap, w_ref[blk, k * Cp:(k + 1) * Cp, :],
                           preferred_element_type=jnp.float32)
            acc = part if acc is None else acc + part
        return acc

    for b, d in enumerate(dilations):                 # static unroll over blocks
        # ---- conv1 (dilated, causal) + bias + ReLU ----
        for t0 in range(0, Lp, chunk):                # bounded vreg pressure
            tl = min(chunk, Lp - t0)
            h1 = jnp.maximum(conv_chunk(buf_a, t0, tl, d, w1_ref, b) + b1_ref[b], 0.0)
            buf_b[P + t0:P + t0 + tl, :] = h1.astype(cdt)

        # ---- conv2 + ReLU, residual (identity or 1x1 conv), final ReLU ----
        for t0 in range(0, Lp, chunk):
            tl = min(chunk, Lp - t0)
            h2 = jnp.maximum(conv_chunk(buf_b, t0, tl, d, w2_ref, b) + b2_ref[b], 0.0)
            xin = buf_a[P + t0:P + t0 + tl, :]
            if has_ds[b]:
                res = jnp.dot(xin, wd_ref[b],
                              preferred_element_type=jnp.float32) + bd_ref[b]
            else:
                res = xin.astype(jnp.float32)
            out = jnp.maximum(h2 + res, 0.0)          # f32 epilogue, single cast
            buf_a[P + t0:P + t0 + tl, :] = out.astype(cdt)

    o_ref[0] = buf_a[P:P + Lp, :].astype(o_ref.dtype)


def tcn_stack(x, stack, *, compute_dtype):
    """x: (N, Lp, Cp) in compute_dtype.  stack: packed/padded block weights."""
    N, Lp, Cp = x.shape
    K = stack["K"]
    dilations = stack["dilations"]
    has_ds = stack["has_ds"]
    nblk = stack["w1"].shape[0]
    cbytes = jnp.dtype(compute_dtype).itemsize
    row_q = _row_quantum(compute_dtype)
    assert Lp % row_q == 0, (Lp, row_q)

    # Causal pad rounded up to the sublane quantum: every chunk store lands on a
    # sublane-aligned row offset; the extra rows are zeros the first taps read.
    P = _round_up(max(1, (K - 1) * max(dilations)), row_q)
    rows = _round_up(P + Lp, row_q)

    # Chunk the time axis to ~128 KiB of f32 accumulator per chunk.
    chunk = max(row_q, min(512, ((128 * 1024) // (Cp * 4)) // row_q * row_q))
    chunk = min(Lp, chunk)

    kern = functools.partial(_tcn_stack_kernel, K=K, dilations=dilations,
                             has_ds=has_ds, Lp=Lp, P=P, chunk=chunk)

    # VMEM budget (weights are single-buffered via pl.Buffered(1)).
    w_bytes = (stack["w1"].size + stack["w2"].size + stack["wd"].size) * cbytes
    b_bytes = (stack["b1"].size + stack["b2"].size + stack["bd"].size) * 4
    io_bytes = 2 * 2 * Lp * Cp * cbytes          # in + out blocks, double-buffered
    sc_bytes = 2 * rows * Cp * cbytes            # ping-pong scratch
    est = w_bytes + b_bytes + io_bytes + sc_bytes + (6 << 20)
    cap = _vmem_cap_bytes()
    if est > cap:
        # TODO(synk): for very long sequences on v7x (64 MiB VMEM), tile L in the
        # grid with a (K-1)*max_dilation halo carried per layer (chunked TCN).
        raise ValueError(
            f"TCN resident working set ~{est >> 20} MiB exceeds VMEM cap "
            f"{cap >> 20} MiB; reduce L or use bf16 activations.")
    vmem_bytes = int(min(max(est, 32 << 20), cap))

    const = dict(pipeline_mode=pl.Buffered(1))   # constant-index weights: 1 buffer
    # TODO(synk): when N == 1 on v7x (2 TCs), shard L across a second parallel
    # grid axis with a causal halo so both TensorCores get work.
    return pl.pallas_call(
        kern,
        out_shape=jax.ShapeDtypeStruct((N, Lp, Cp), compute_dtype),
        grid=(N,),
        in_specs=[
            pl.BlockSpec((1, Lp, Cp), lambda n: (n, 0, 0)),
            pl.BlockSpec((nblk, K * Cp, Cp), lambda n: (0, 0, 0), **const),
            pl.BlockSpec((nblk, 1, Cp), lambda n: (0, 0, 0), **const),
            pl.BlockSpec((nblk, K * Cp, Cp), lambda n: (0, 0, 0), **const),
            pl.BlockSpec((nblk, 1, Cp), lambda n: (0, 0, 0), **const),
            pl.BlockSpec((nblk, Cp, Cp), lambda n: (0, 0, 0), **const),
            pl.BlockSpec((nblk, 1, Cp), lambda n: (0, 0, 0), **const),
        ],
        out_specs=pl.BlockSpec((1, Lp, Cp), lambda n: (n, 0, 0)),
        scratch_shapes=[pltpu.VMEM((rows, Cp), compute_dtype),
                        pltpu.VMEM((rows, Cp), compute_dtype)],
        compiler_params=pltpu.CompilerParams(
            dimension_semantics=("parallel",),
            vmem_limit_bytes=vmem_bytes),
    )(x, stack["w1"], stack["b1"], stack["w2"], stack["b2"],
      stack["wd"], stack["bd"])


# ------------------------- tiled decoder (Linear) kernel --------------------- #

def _decoder_kernel(x_ref, w_ref, b_ref, o_ref):
    acc = jnp.dot(x_ref[0], w_ref[...], preferred_element_type=jnp.float32)
    o_ref[0] = (acc + b_ref[...]).astype(o_ref.dtype)


def decoder_matmul(x, w, b, *, out_dtype=jnp.float32):
    """x: (N, Lp, Cp);  w: (Cp, Vp);  b: (1, Vp) f32  ->  (N, Lp, Vp) out_dtype."""
    N, Lp, Cp = x.shape
    _, Vp = w.shape
    TL = _pick_tile(Lp, 512, 8)
    cap = _vmem_cap_bytes()
    w_bytes = Cp * Vp * jnp.dtype(w.dtype).itemsize

    if w_bytes <= min(16 << 20, cap // 3):
        # Weight + bias fully VMEM-resident, fetched once (single buffer):
        # total weight HBM traffic is Cp*Vp bytes instead of per-(n,l) re-streams.
        TV = Vp
        grid = (N, Lp // TL)
        in_specs = [
            pl.BlockSpec((1, TL, Cp), lambda n, l: (n, l, 0)),
            pl.BlockSpec((Cp, Vp), lambda n, l: (0, 0), pipeline_mode=pl.Buffered(1)),
            pl.BlockSpec((1, Vp), lambda n, l: (0, 0), pipeline_mode=pl.Buffered(1)),
        ]
        out_specs = pl.BlockSpec((1, TL, Vp), lambda n, l: (n, l, 0))
        dims = ("parallel", "parallel")
    else:
        # Large vocab: tile V; L innermost so each (Cp, TV) weight tile is
        # fetched once per (n, v) instead of once per (n, l, v).
        TV = _pick_tile(Vp, 1024, 128)
        grid = (N, Vp // TV, Lp // TL)
        in_specs = [
            pl.BlockSpec((1, TL, Cp), lambda n, v, l: (n, l, 0)),
            pl.BlockSpec((Cp, TV), lambda n, v, l: (0, v)),
            pl.BlockSpec((1, TV), lambda n, v, l: (0, v)),
        ]
        out_specs = pl.BlockSpec((1, TL, TV), lambda n, v, l: (n, l, v))
        dims = ("parallel", "parallel", "arbitrary")

    obytes = jnp.dtype(out_dtype).itemsize
    est = (2 * TL * Cp * x.dtype.itemsize
           + 2 * (Cp * TV + TV) * w.dtype.itemsize
           + 2 * TL * TV * obytes + (6 << 20))
    vmem_bytes = int(min(max(est, 32 << 20), cap))

    return pl.pallas_call(
        _decoder_kernel,
        out_shape=jax.ShapeDtypeStruct((N, Lp, Vp), out_dtype),
        grid=grid,
        in_specs=in_specs,
        out_specs=out_specs,
        compiler_params=pltpu.CompilerParams(
            dimension_semantics=dims,
            vmem_limit_bytes=vmem_bytes),
    )(x, w, b)


# ------------------------------ parameter packing ---------------------------- #

def init_elastic_tcn_params(key, *, vocab, emb_dim, num_channels, kernel_size,
                            expand_ratio=1.0):
    """Deterministic synthetic parameters (shapes of ElasticTCN / set_max_net)."""
    ks = jax.random.split(key, 4 + 6 * len(num_channels))
    ki = iter(ks)
    params = {
        "encoder_w": 0.01 * jax.random.normal(next(ki), (vocab, emb_dim), jnp.float32),
        "decoder_w": 0.01 * jax.random.normal(next(ki), (1, num_channels[-1], vocab), jnp.float32),
        "decoder_b": jnp.zeros((vocab,), jnp.float32),
        "blocks": [],
    }
    in_ch = emb_dim
    for i, out_ch in enumerate(num_channels):
        mid_ch = max(1, int(round(out_ch * expand_ratio)))
        blk = {
            "dilation": 2 ** i,
            "w1": 0.01 * jax.random.normal(next(ki), (kernel_size, in_ch, mid_ch), jnp.float32),
            "b1": 0.01 * jax.random.normal(next(ki), (mid_ch,), jnp.float32),
            "w2": 0.01 * jax.random.normal(next(ki), (kernel_size, mid_ch, out_ch), jnp.float32),
            "b2": 0.01 * jax.random.normal(next(ki), (out_ch,), jnp.float32),
        }
        if in_ch != out_ch:
            blk["wd"] = 0.01 * jax.random.normal(next(ki), (1, in_ch, out_ch), jnp.float32)
            blk["bd"] = 0.01 * jax.random.normal(next(ki), (out_ch,), jnp.float32)
        else:
            blk["wd"] = None
            blk["bd"] = None
            _ = (next(ki), next(ki))      # deterministic key consumption either way
        params["blocks"].append(blk)
        in_ch = out_ch
    return params


def pack_params(params, *, compute_dtype=jnp.float32):
    """Zero-pad every channel dim to a common 128-multiple and stack per-block
    weights for the fused stack kernel.  Padded lanes stay exactly zero through
    the whole stack (zero weight rows/cols, zero bias), so numerics match."""
    blocks = params["blocks"]
    K = blocks[0]["w1"].shape[0]
    chans = [params["encoder_w"].shape[1]]
    for blk in blocks:
        chans += [blk["w1"].shape[2], blk["w2"].shape[2]]
    Cp = _round_up(max(chans), 128)
    vocab = params["decoder_w"].shape[2]
    Vp = _round_up(vocab, 128)

    def pad_w(w):                                   # (K, cin, cout) -> (K, Cp, Cp)
        kk, ci, co = w.shape
        return jnp.zeros((kk, Cp, Cp), jnp.float32).at[:, :ci, :co].set(w)

    def pad_b(b):
        return jnp.zeros((Cp,), jnp.float32).at[:b.shape[0]].set(b)

    w1s, b1s, w2s, b2s, wds, bds, dils, has_ds = [], [], [], [], [], [], [], []
    for blk in blocks:
        dils.append(blk["dilation"])
        w1s.append(pad_w(blk["w1"]).reshape(K * Cp, Cp))    # per-tap weight layout
        w2s.append(pad_w(blk["w2"]).reshape(K * Cp, Cp))
        b1s.append(pad_b(blk["b1"]))
        b2s.append(pad_b(blk["b2"]))
        if blk["wd"] is not None:
            wds.append(pad_w(blk["wd"])[0])
            bds.append(pad_b(blk["bd"]))
            has_ds.append(True)
        else:
            wds.append(jnp.zeros((Cp, Cp), jnp.float32))
            bds.append(jnp.zeros((Cp,), jnp.float32))
            has_ds.append(False)

    stack = {
        "K": K, "dilations": tuple(dils), "has_ds": tuple(has_ds),
        "w1": jnp.stack(w1s).astype(compute_dtype),
        "w2": jnp.stack(w2s).astype(compute_dtype),
        "wd": jnp.stack(wds).astype(compute_dtype),
        "b1": jnp.stack(b1s)[:, None, :],            # (B, 1, Cp) f32
        "b2": jnp.stack(b2s)[:, None, :],
        "bd": jnp.stack(bds)[:, None, :],
    }

    enc = jnp.zeros((params["encoder_w"].shape[0], Cp), jnp.float32)
    enc = enc.at[:, :params["encoder_w"].shape[1]].set(params["encoder_w"])

    dw = params["decoder_w"][0]                      # (C_last, vocab)
    dec_w = jnp.zeros((Cp, Vp), jnp.float32).at[:dw.shape[0], :vocab].set(dw)
    dec_b = jnp.zeros((1, Vp), jnp.float32).at[0, :vocab].set(params["decoder_b"])

    return {
        "stack": stack,
        "encoder_w": enc.astype(compute_dtype),
        "decoder_w": dec_w.astype(compute_dtype),
        "decoder_b": dec_b,                          # f32
        "vocab": vocab,
        "compute_dtype": compute_dtype,
    }


# ------------------------------ forward pass -------------------------------- #

def elastic_tcn_forward(packed, input_ids, *, logits_dtype=jnp.float32):
    """input_ids: (N, L) int32 -> logits (N, L, vocab).  Eval mode (no dropout)."""
    N, L = input_ids.shape
    cdt = packed["compute_dtype"]
    row_q = _row_quantum(cdt)
    Lp = _round_up(L, row_q)
    # TODO(synk): fuse the embedding gather + L->Lp pad into the TCN kernel via
    # scalar-prefetched ids and a VMEM-resident table (or DMA gather) to remove
    # one (N, Lp, Cp) HBM round trip; kept as an XLA take for robustness.
    x = jnp.take(packed["encoder_w"], input_ids, axis=0)        # (N, L, Cp)
    if Lp != L:
        x = jnp.pad(x, ((0, 0), (0, Lp - L), (0, 0)))           # causal: safe
    y = tcn_stack(x, packed["stack"], compute_dtype=cdt)
    logits = decoder_matmul(y, packed["decoder_w"], packed["decoder_b"],
                            out_dtype=logits_dtype)
    return logits[:, :L, :packed["vocab"]]


# --------------------------- pure-JAX reference ------------------------------ #

def _ref_conv(x, w, b, dilation, relu):
    K = w.shape[0]
    pad = (K - 1) * dilation
    xpad = jnp.pad(x, ((0, 0), (pad, 0), (0, 0)))
    L = x.shape[1]
    acc = b
    for k in range(K):
        acc = acc + jnp.einsum("nlc,cd->nld",
                               xpad[:, k * dilation:k * dilation + L, :], w[k])
    return jnp.maximum(acc, 0.0) if relu else acc


def _ref_forward(params, input_ids):
    x = jnp.take(params["encoder_w"], input_ids, axis=0)
    for blk in params["blocks"]:
        d = blk["dilation"]
        h1 = _ref_conv(x, blk["w1"], blk["b1"], d, True)
        h2 = _ref_conv(h1, blk["w2"], blk["b2"], d, True)
        res = x if blk["wd"] is None else _ref_conv(x, blk["wd"], blk["bd"], 1, False)
        x = jnp.maximum(h2 + res, 0.0)
    return _ref_conv(x, params["decoder_w"], params["decoder_b"], 1, False)


# ---------------------------------- main ------------------------------------ #

if __name__ == "__main__":
    key = jax.random.PRNGKey(0)
    k_param, k_ids = jax.random.split(key)

    # Small config consistent with ElasticTCN(input_size, output_size, num_channels, ...)
    vocab = 32          # output_size
    emb_dim = 16        # input_size
    num_channels = [16, 24]
    kernel_size = 2
    N, L = 2, 8

    # set_max_net(): full depth, max expand ratio.
    # TODO(synk): elastic subnet sampling / tied weights are config-time only.
    params = init_elastic_tcn_params(
        k_param, vocab=vocab, emb_dim=emb_dim, num_channels=num_channels,
        kernel_size=kernel_size, expand_ratio=1.0)

    input_ids = jax.random.randint(k_ids, (N, L), 0, vocab, dtype=jnp.int32)
    ref = jax.block_until_ready(_ref_forward(params, input_ids))

    # f32 compute path (f32 logits).
    packed_f32 = pack_params(params, compute_dtype=jnp.float32)
    out_f32 = jax.block_until_ready(elastic_tcn_forward(packed_f32, input_ids))
    assert out_f32.shape == (N, L, vocab), out_f32.shape
    assert bool(jnp.all(jnp.isfinite(out_f32)))
    assert jnp.allclose(out_f32, ref, atol=1e-4, rtol=5e-3), "f32 mismatch vs JAX reference"

    # bf16 compute path (v6e/v7x MXU peak): bf16 storage/matmul inputs, f32
    # accumulation + f32 epilogue, bf16 logits (largest HBM write halved).
    packed_bf16 = pack_params(params, compute_dtype=jnp.bfloat16)
    out_bf16 = jax.block_until_ready(
        elastic_tcn_forward(packed_bf16, input_ids, logits_dtype=jnp.bfloat16))
    assert out_bf16.dtype == jnp.bfloat16
    out_bf16_f32 = out_bf16.astype(jnp.float32)
    assert bool(jnp.all(jnp.isfinite(out_bf16_f32)))
    assert jnp.allclose(out_bf16_f32, ref, atol=3e-3, rtol=5e-2), "bf16 mismatch vs JAX reference"

    print("KERNEL_OK")
</pallas_src>

<mosaic_0001>
module attributes {stable_mosaic.version = 11 : i64} {
  func.func @_tcn_stack_kernel(%arg0: i32, %arg1: memref<1x8x128xf32, #tpu.memory_space<vmem>>, %arg2: memref<2x256x128xf32, #tpu.memory_space<vmem>>, %arg3: memref<2x1x128xf32, #tpu.memory_space<vmem>>, %arg4: memref<2x256x128xf32, #tpu.memory_space<vmem>>, %arg5: memref<2x1x128xf32, #tpu.memory_space<vmem>>, %arg6: memref<2x128x128xf32, #tpu.memory_space<vmem>>, %arg7: memref<2x1x128xf32, #tpu.memory_space<vmem>>, %arg8: memref<1x8x128xf32, #tpu.memory_space<vmem>>, %arg9: memref<16x128xf32, #tpu.memory_space<vmem>>, %arg10: memref<16x128xf32, #tpu.memory_space<vmem>>) attributes {dimension_semantics = [#tpu.dimension_semantics<parallel>], iteration_bounds = array<i64: 2>, scalar_prefetch = 0 : i64, scratch_operands = 2 : i64, tpu.core_type = #tpu.core_type<tc>, window_params = [{transform_indices = @transform_0, window_bounds = array<i64: 1, 8, 128>}, {pipeline_mode = #tpu.pipeline_mode<synchronous>, transform_indices = @transform_1, window_bounds = array<i64: 2, 256, 128>}, {pipeline_mode = #tpu.pipeline_mode<synchronous>, transform_indices = @transform_2, window_bounds = array<i64: 2, 1, 128>}, {pipeline_mode = #tpu.pipeline_mode<synchronous>, transform_indices = @transform_3, window_bounds = array<i64: 2, 256, 128>}, {pipeline_mode = #tpu.pipeline_mode<synchronous>, transform_indices = @transform_4, window_bounds = array<i64: 2, 1, 128>}, {pipeline_mode = #tpu.pipeline_mode<synchronous>, transform_indices = @transform_5, window_bounds = array<i64: 2, 128, 128>}, {pipeline_mode = #tpu.pipeline_mode<synchronous>, transform_indices = @transform_6, window_bounds = array<i64: 2, 1, 128>}, {transform_indices = @transform_7, window_bounds = array<i64: 1, 8, 128>}]} {
    %cst = arith.constant 0.000000e+00 : f32
    %0 = vector.broadcast %cst : f32 to vector<8x128xf32>
    %c0 = arith.constant 0 : index
    %c0_0 = arith.constant 0 : index
    %1 = vector.load %arg9[%c0, %c0_0] : memref<16x128xf32, #tpu.memory_space<vmem>>, vector<8x128xf32>
    tpu.vector_store %arg9[%c0, %c0_0], %0 {strides = array<i32>} : memref<16x128xf32, #tpu.memory_space<vmem>>, vector<8x128xf32>,
    %c0_1 = arith.constant 0 : index
    %c0_2 = arith.constant 0 : index
    %2 = vector.load %arg10[%c0_1, %c0_2] : memref<16x128xf32, #tpu.memory_space<vmem>>, vector<8x128xf32>
    tpu.vector_store %arg10[%c0_1, %c0_2], %0 {strides = array<i32>} : memref<16x128xf32, #tpu.memory_space<vmem>>, vector<8x128xf32>,
    %c0_3 = arith.constant 0 : index
    %c0_4 = arith.constant 0 : index
    %c0_5 = arith.constant 0 : index
    %3 = vector.load %arg1[%c0_3, %c0_4, %c0_5] : memref<1x8x128xf32, #tpu.memory_space<vmem>>, vector<1x8x128xf32>
    %4 = vector.shape_cast %3 : vector<1x8x128xf32> to vector<8x128xf32>
    %c8 = arith.constant 8 : index
    %c0_6 = arith.constant 0 : index
    %5 = vector.load %arg9[%c8, %c0_6] : memref<16x128xf32, #tpu.memory_space<vmem>>, vector<8x128xf32>
    tpu.vector_store %arg9[%c8, %c0_6], %4 {strides = array<i32>} : memref<16x128xf32, #tpu.memory_space<vmem>>, vector<8x128xf32>,
    %c7 = arith.constant 7 : index
    %c0_7 = arith.constant 0 : index
    %6 = vector.load %arg9[%c7, %c0_7] : memref<16x128xf32, #tpu.memory_space<vmem>>, vector<8x128xf32>
    %c0_8 = arith.constant 0 : index
    %c0_9 = arith.constant 0 : index
    %c0_10 = arith.constant 0 : index
    %7 = vector.load %arg2[%c0_8, %c0_9, %c0_10] : memref<2x256x128xf32, #tpu.memory_space<vmem>>, vector<1x128x128xf32>
    %8 = vector.shape_cast %7 : vector<1x128x128xf32> to vector<128x128xf32>
    %cst_11 = arith.constant dense<0.000000e+00> : vector<8x128xf32>
    %9 = tpu.matmul %6, %8, %cst_11 {dimension_numbers = #tpu.dot_dimension_numbers<[1], [0], [0], [1], [0, 0, 1, 1], [], []>} : vector<8x128xf32>, vector<128x128xf32>, vector<8x128xf32> -> vector<8x128xf32>
    %c8_12 = arith.constant 8 : index
    %c0_13 = arith.constant 0 : index
    %10 = vector.load %arg9[%c8_12, %c0_13] : memref<16x128xf32, #tpu.memory_space<vmem>>, vector<8x128xf32>
    %c0_14 = arith.constant 0 : index
    %c128 = arith.constant 128 : index
    %c0_15 = arith.constant 0 : index
    %11 = vector.load %arg2[%c0_14, %c128, %c0_15] : memref<2x256x128xf32, #tpu.memory_space<vmem>>, vector<1x128x128xf32>
    %12 = vector.shape_cast %11 : vector<1x128x128xf32> to vector<128x128xf32>
    %cst_16 = arith.constant dense<0.000000e+00> : vector<8x128xf32>
    %13 = tpu.matmul %10, %12, %cst_16 {dimension_numbers = #tpu.dot_dimension_numbers<[1], [0], [0], [1], [0, 0, 1, 1], [], []>} : vector<8x128xf32>, vector<128x128xf32>, vector<8x128xf32> -> vector<8x128xf32>
    %14 = arith.addf %9, %13 : vector<8x128xf32>
    %c0_17 = arith.constant 0 : index
    %c0_18 = arith.constant 0 : index
    %c0_19 = arith.constant 0 : index
    %15 = vector.load %arg3[%c0_17, %c0_18, %c0_19] : memref<2x1x128xf32, #tpu.memory_space<vmem>>, vector<1x1x128xf32>
    %16 = vector.shape_cast %15 : vector<1x1x128xf32> to vector<1x128xf32>
    %17 = vector.broadcast %16 : vector<1x128xf32> to vector<8x128xf32>
    %18 = arith.addf %14, %17 : vector<8x128xf32>
    %cst_20 = arith.constant 0.000000e+00 : f32
    %19 = vector.broadcast %cst_20 : f32 to vector<8x128xf32>
    %20 = arith.maximumf %18, %19 : vector<8x128xf32>
    %c8_21 = arith.constant 8 : index
    %c0_22 = arith.constant 0 : index
    %21 = vector.load %arg10[%c8_21, %c0_22] : memref<16x128xf32, #tpu.memory_space<vmem>>, vector<8x128xf32>
    tpu.vector_store %arg10[%c8_21, %c0_22], %20 {strides = array<i32>} : memref<16x128xf32, #tpu.memory_space<vmem>>, vector<8x128xf32>,
    %c7_23 = arith.constant 7 : index
    %c0_24 = arith.constant 0 : index
    %22 = vector.load %arg10[%c7_23, %c0_24] : memref<16x128xf32, #tpu.memory_space<vmem>>, vector<8x128xf32>
    %c0_25 = arith.constant 0 : index
    %c0_26 = arith.constant 0 : index
    %c0_27 = arith.constant 0 : index
    %23 = vector.load %arg4[%c0_25, %c0_26, %c0_27] : memref<2x256x128xf32, #tpu.memory_space<vmem>>, vector<1x128x128xf32>
    %24 = vector.shape_cast %23 : vector<1x128x128xf32> to vector<128x128xf32>
    %cst_28 = arith.constant dense<0.000000e+00> : vector<8x128xf32>
    %25 = tpu.matmul %22, %24, %cst_28 {dimension_numbers = #tpu.dot_dimension_numbers<[1], [0], [0], [1], [0, 0, 1, 1], [], []>} : vector<8x128xf32>, vector<128x128xf32>, vector<8x128xf32> -> vector<8x128xf32>
    %c8_29 = arith.constant 8 : index
    %c0_30 = arith.constant 0 : index
    %26 = vector.load %arg10[%c8_29, %c0_30] : memref<16x128xf32, #tpu.memory_space<vmem>>, vector<8x128xf32>
    %c0_31 = arith.constant 0 : index
    %c128_32 = arith.constant 128 : index
    %c0_33 = arith.constant 0 : index
    %27 = vector.load %arg4[%c0_31, %c128_32, %c0_33] : memref<2x256x128xf32, #tpu.memory_space<vmem>>, vector<1x128x128xf32>
    %28 = vector.shape_cast %27 : vector<1x128x128xf32> to vector<128x128xf32>
    %cst_34 = arith.constant dense<0.000000e+00> : vector<8x128xf32>
    %29 = tpu.matmul %26, %28, %cst_34 {dimension_numbers = #tpu.dot_dimension_numbers<[1], [0], [0], [1], [0, 0, 1, 1], [], []>} : vector<8x128xf32>, vector<128x128xf32>, vector<8x128xf32> -> vector<8x128xf32>
    %30 = arith.addf %25, %29 : vector<8x128xf32>
    %c0_35 = arith.constant 0 : index
    %c0_36 = arith.constant 0 : index
    %c0_37 = arith.constant 0 : index
    %31 = vector.load %arg5[%c0_35, %c0_36, %c0_37] : memref<2x1x128xf32, #tpu.memory_space<vmem>>, vector<1x1x128xf32>
    %32 = vector.shape_cast %31 : vector<1x1x128xf32> to vector<1x128xf32>
    %33 = vector.broadcast %32 : vector<1x128xf32> to vector<8x128xf32>
    %34 = arith.addf %30, %33 : vector<8x128xf32>
    %cst_38 = arith.constant 0.000000e+00 : f32
    %35 = vector.broadcast %cst_38 : f32 to vector<8x128xf32>
    %36 = arith.maximumf %34, %35 : vector<8x128xf32>
    %c8_39 = arith.constant 8 : index
    %c0_40 = arith.constant 0 : index
    %37 = vector.load %arg9[%c8_39, %c0_40] : memref<16x128xf32, #tpu.memory_space<vmem>>, vector<8x128xf32>
    %38 = arith.addf %36, %37 : vector<8x128xf32>
    %cst_41 = arith.constant 0.000000e+00 : f32
    %39 = vector.broadcast %cst_41 : f32 to vector<8x128xf32>
    %40 = arith.maximumf %38, %39 : vector<8x128xf32>
    %c8_42 = arith.constant 8 : index
    %c0_43 = arith.constant 0 : index
    %41 = vector.load %arg9[%c8_42, %c0_43] : memref<16x128xf32, #tpu.memory_space<vmem>>, vector<8x128xf32>
    tpu.vector_store %arg9[%c8_42, %c0_43], %40 {strides = array<i32>} : memref<16x128xf32, #tpu.memory_space<vmem>>, vector<8x128xf32>,
    %c6 = arith.constant 6 : index
    %c0_44 = arith.constant 0 : index
    %42 = vector.load %arg9[%c6, %c0_44] : memref<16x128xf32, #tpu.memory_space<vmem>>, vector<8x128xf32>
    %c1 = arith.constant 1 : index
    %c0_45 = arith.constant 0 : index
    %c0_46 = arith.constant 0 : index
    %43 = vector.load %arg2[%c1, %c0_45, %c0_46] : memref<2x256x128xf32, #tpu.memory_space<vmem>>, vector<1x128x128xf32>
    %44 = vector.shape_cast %43 : vector<1x128x128xf32> to vector<128x128xf32>
    %cst_47 = arith.constant dense<0.000000e+00> : vector<8x128xf32>
    %45 = tpu.matmul %42, %44, %cst_47 {dimension_numbers = #tpu.dot_dimension_numbers<[1], [0], [0], [1], [0, 0, 1, 1], [], []>} : vector<8x128xf32>, vector<128x128xf32>, vector<8x128xf32> -> vector<8x128xf32>
    %c8_48 = arith.constant 8 : index
    %c0_49 = arith.constant 0 : index
    %46 = vector.load %arg9[%c8_48, %c0_49] : memref<16x128xf32, #tpu.memory_space<vmem>>, vector<8x128xf32>
    %c1_50 = arith.constant 1 : index
    %c128_51 = arith.constant 128 : index
    %c0_52 = arith.constant 0 : index
    %47 = vector.load %arg2[%c1_50, %c128_51, %c0_52] : memref<2x256x128xf32, #tpu.memory_space<vmem>>, vector<1x128x128xf32>
    %48 = vector.shape_cast %47 : vector<1x128x128xf32> to vector<128x128xf32>
    %cst_53 = arith.constant dense<0.000000e+00> : vector<8x128xf32>
    %49 = tpu.matmul %46, %48, %cst_53 {dimension_numbers = #tpu.dot_dimension_numbers<[1], [0], [0], [1], [0, 0, 1, 1], [], []>} : vector<8x128xf32>, vector<128x128xf32>, vector<8x128xf32> -> vector<8x128xf32>
    %50 = arith.addf %45, %49 : vector<8x128xf32>
    %c1_54 = arith.constant 1 : index
    %c0_55 = arith.constant 0 : index
    %c0_56 = arith.constant 0 : index
    %51 = vector.load %arg3[%c1_54, %c0_55, %c0_56] : memref<2x1x128xf32, #tpu.memory_space<vmem>>, vector<1x1x128xf32>
    %52 = vector.shape_cast %51 : vector<1x1x128xf32> to vector<1x128xf32>
    %53 = vector.broadcast %52 : vector<1x128xf32> to vector<8x128xf32>
    %54 = arith.addf %50, %53 : vector<8x128xf32>
    %cst_57 = arith.constant 0.000000e+00 : f32
    %55 = vector.broadcast %cst_57 : f32 to vector<8x128xf32>
    %56 = arith.maximumf %54, %55 : vector<8x128xf32>
    %c8_58 = arith.constant 8 : index
    %c0_59 = arith.constant 0 : index
    %57 = vector.load %arg10[%c8_58, %c0_59] : memref<16x128xf32, #tpu.memory_space<vmem>>, vector<8x128xf32>
    tpu.vector_store %arg10[%c8_58, %c0_59], %56 {strides = array<i32>} : memref<16x128xf32, #tpu.memory_space<vmem>>, vector<8x128xf32>,
    %c6_60 = arith.constant 6 : index
    %c0_61 = arith.constant 0 : index
    %58 = vector.load %arg10[%c6_60, %c0_61] : memref<16x128xf32, #tpu.memory_space<vmem>>, vector<8x128xf32>
    %c1_62 = arith.constant 1 : index
    %c0_63 = arith.constant 0 : index
    %c0_64 = arith.constant 0 : index
    %59 = vector.load %arg4[%c1_62, %c0_63, %c0_64] : memref<2x256x128xf32, #tpu.memory_space<vmem>>, vector<1x128x128xf32>
    %60 = vector.shape_cast %59 : vector<1x128x128xf32> to vector<128x128xf32>
    %cst_65 = arith.constant dense<0.000000e+00> : vector<8x128xf32>
    %61 = tpu.matmul %58, %60, %cst_65 {dimension_numbers = #tpu.dot_dimension_numbers<[1], [0], [0], [1], [0, 0, 1, 1], [], []>} : vector<8x128xf32>, vector<128x128xf32>, vector<8x128xf32> -> vector<8x128xf32>
    %c8_66 = arith.constant 8 : index
    %c0_67 = arith.constant 0 : index
    %62 = vector.load %arg10[%c8_66, %c0_67] : memref<16x128xf32, #tpu.memory_space<vmem>>, vector<8x128xf32>
    %c1_68 = arith.constant 1 : index
    %c128_69 = arith.constant 128 : index
    %c0_70 = arith.constant 0 : index
    %63 = vector.load %arg4[%c1_68, %c128_69, %c0_70] : memref<2x256x128xf32, #tpu.memory_space<vmem>>, vector<1x128x128xf32>
    %64 = vector.shape_cast %63 : vector<1x128x128xf32> to vector<128x128xf32>
    %cst_71 = arith.constant dense<0.000000e+00> : vector<8x128xf32>
    %65 = tpu.matmul %62, %64, %cst_71 {dimension_numbers = #tpu.dot_dimension_numbers<[1], [0], [0], [1], [0, 0, 1, 1], [], []>} : vector<8x128xf32>, vector<128x128xf32>, vector<8x128xf32> -> vector<8x128xf32>
    %66 = arith.addf %61, %65 : vector<8x128xf32>
    %c1_72 = arith.constant 1 : index
    %c0_73 = arith.constant 0 : index
    %c0_74 = arith.constant 0 : index
    %67 = vector.load %arg5[%c1_72, %c0_73, %c0_74] : memref<2x1x128xf32, #tpu.memory_space<vmem>>, vector<1x1x128xf32>
    %68 = vector.shape_cast %67 : vector<1x1x128xf32> to vector<1x128xf32>
    %69 = vector.broadcast %68 : vector<1x128xf32> to vector<8x128xf32>
    %70 = arith.addf %66, %69 : vector<8x128xf32>
    %cst_75 = arith.constant 0.000000e+00 : f32
    %71 = vector.broadcast %cst_75 : f32 to vector<8x128xf32>
    %72 = arith.maximumf %70, %71 : vector<8x128xf32>
    %c8_76 = arith.constant 8 : index
    %c0_77 = arith.constant 0 : index
    %73 = vector.load %arg9[%c8_76, %c0_77] : memref<16x128xf32, #tpu.memory_space<vmem>>, vector<8x128xf32>
    %c1_78 = arith.constant 1 : index
    %c0_79 = arith.constant 0 : index
    %c0_80 = arith.constant 0 : index
    %74 = vector.load %arg6[%c1_78, %c0_79, %c0_80] : memref<2x128x128xf32, #tpu.memory_space<vmem>>, vector<1x128x128xf32>
    %75 = vector.shape_cast %74 : vector<1x128x128xf32> to vector<128x128xf32>
    %cst_81 = arith.constant dense<0.000000e+00> : vector<8x128xf32>
    %76 = tpu.matmul %73, %75, %cst_81 {dimension_numbers = #tpu.dot_dimension_numbers<[1], [0], [0], [1], [0, 0, 1, 1], [], []>} : vector<8x128xf32>, vector<128x128xf32>, vector<8x128xf32> -> vector<8x128xf32>
    %c1_82 = arith.constant 1 : index
    %c0_83 = arith.constant 0 : index
    %c0_84 = arith.constant 0 : index
    %77 = vector.load %arg7[%c1_82, %c0_83, %c0_84] : memref<2x1x128xf32, #tpu.memory_space<vmem>>, vector<1x1x128xf32>
    %78 = vector.shape_cast %77 : vector<1x1x128xf32> to vector<1x128xf32>
    %79 = vector.broadcast %78 : vector<1x128xf32> to vector<8x128xf32>
    %80 = arith.addf %76, %79 : vector<8x128xf32>
    %81 = arith.addf %72, %80 : vector<8x128xf32>
    %cst_85 = arith.constant 0.000000e+00 : f32
    %82 = vector.broadcast %cst_85 : f32 to vector<8x128xf32>
    %83 = arith.maximumf %81, %82 : vector<8x128xf32>
    %c8_86 = arith.constant 8 : index
    %c0_87 = arith.constant 0 : index
    %84 = vector.load %arg9[%c8_86, %c0_87] : memref<16x128xf32, #tpu.memory_space<vmem>>, vector<8x128xf32>
    tpu.vector_store %arg9[%c8_86, %c0_87], %83 {strides = array<i32>} : memref<16x128xf32, #tpu.memory_space<vmem>>, vector<8x128xf32>,
    %c8_88 = arith.constant 8 : index
    %c0_89 = arith.constant 0 : index
    %85 = vector.load %arg9[%c8_88, %c0_89] : memref<16x128xf32, #tpu.memory_space<vmem>>, vector<8x128xf32>
    %c0_90 = arith.constant 0 : index
    %c0_91 = arith.constant 0 : index
    %c0_92 = arith.constant 0 : index
    %86 = vector.load %arg8[%c0_90, %c0_91, %c0_92] : memref<1x8x128xf32, #tpu.memory_space<vmem>>, vector<1x8x128xf32>
    %87 = vector.shape_cast %86 : vector<1x8x128xf32> to vector<8x128xf32>
    %88 = vector.shape_cast %85 : vector<8x128xf32> to vector<1x8x128xf32>
    tpu.vector_store %arg8[%c0_90, %c0_91, %c0_92], %88 {strides = array<i32>} : memref<1x8x128xf32, #tpu.memory_space<vmem>>, vector<1x8x128xf32>,
    return
  }
  func.func @transform_0(%arg0: i32) -> (i32, i32, i32) {
    %c0_i32 = arith.constant 0 : i32
    %c0_i32_0 = arith.constant 0 : i32
    %c0_i32_1 = arith.constant 0 : i32
    return %arg0, %c0_i32, %c0_i32_0 : i32, i32, i32
  }
  func.func @transform_1(%arg0: i32) -> (i32, i32, i32) {
    %c0_i32 = arith.constant 0 : i32
    %c0_i32_0 = arith.constant 0 : i32
    %c0_i32_1 = arith.constant 0 : i32
    %c0_i32_2 = arith.constant 0 : i32
    return %c0_i32, %c0_i32_0, %c0_i32_1 : i32, i32, i32
  }
  func.func @transform_2(%arg0: i32) -> (i32, i32, i32) {
    %c0_i32 = arith.constant 0 : i32
    %c0_i32_0 = arith.constant 0 : i32
    %c0_i32_1 = arith.constant 0 : i32
    %c0_i32_2 = arith.constant 0 : i32
    return %c0_i32, %c0_i32_0, %c0_i32_1 : i32, i32, i32
  }
  func.func @transform_3(%arg0: i32) -> (i32, i32, i32) {
    %c0_i32 = arith.constant 0 : i32
    %c0_i32_0 = arith.constant 0 : i32
    %c0_i32_1 = arith.constant 0 : i32
    %c0_i32_2 = arith.constant 0 : i32
    return %c0_i32, %c0_i32_0, %c0_i32_1 : i32, i32, i32
  }
  func.func @transform_4(%arg0: i32) -> (i32, i32, i32) {
    %c0_i32 = arith.constant 0 : i32
    %c0_i32_0 = arith.constant 0 : i32
    %c0_i32_1 = arith.constant 0 : i32
    %c0_i32_2 = arith.constant 0 : i32
    return %c0_i32, %c0_i32_0, %c0_i32_1 : i32, i32, i32
  }
  func.func @transform_5(%arg0: i32) -> (i32, i32, i32) {
    %c0_i32 = arith.constant 0 : i32
    %c0_i32_0 = arith.constant 0 : i32
    %c0_i32_1 = arith.constant 0 : i32
    %c0_i32_2 = arith.constant 0 : i32
    return %c0_i32, %c0_i32_0, %c0_i32_1 : i32, i32, i32
  }
  func.func @transform_6(%arg0: i32) -> (i32, i32, i32) {
    %c0_i32 = arith.constant 0 : i32
    %c0_i32_0 = arith.constant 0 : i32
    %c0_i32_1 = arith.constant 0 : i32
    %c0_i32_2 = arith.constant 0 : i32
    return %c0_i32, %c0_i32_0, %c0_i32_1 : i32, i32, i32
  }
  func.func @transform_7(%arg0: i32) -> (i32, i32, i32) {
    %c0_i32 = arith.constant 0 : i32
    %c0_i32_0 = arith.constant 0 : i32
    %c0_i32_1 = arith.constant 0 : i32
    return %arg0, %c0_i32, %c0_i32_0 : i32, i32, i32
  }
}

</mosaic_0001>

<llo_original>
// kernel: tpu_custom_call.1
$region0: #{tpu_custom_call.1}
  #allocation0 [shape = 'u32[]', space=smem, size = 0x4, offset = 0x4, fixed_abs, tag = 'smem constant byte address 0x4 - core index']
  #allocation1 [shape = 'u32[144,128]{1,0:T(1,128)}', space=vmem, size = 0x12000, scoped, tag = 'internal scratch']
  #allocation2 [shape = 'f32[16,128]{1,0:T(8,128)}', space=vmem, size = 0x2000, scoped, tag = 'scratch operand']
  #allocation3 [shape = 'f32[16,128]{1,0:T(8,128)}', space=vmem, size = 0x2000, scoped, tag = 'scratch operand']
  %s0 = inlined_call_operand.hbm [shape: f32[2,8,128], index: 0, kind: input, shape index: {}]
  %s1 = inlined_call_operand.hbm [shape: f32[2,256,128], index: 1, kind: input, shape index: {}]
  %s2 = inlined_call_operand.vmem [shape: f32[2,1,128], index: 2, kind: input, shape index: {}]
  %s3 = inlined_call_operand.hbm [shape: f32[2,256,128], index: 3, kind: input, shape index: {}]
  %s4 = inlined_call_operand.vmem [shape: f32[2,1,128], index: 4, kind: input, shape index: {}]
  %s5 = inlined_call_operand.hbm [shape: f32[2,128,128], index: 5, kind: input, shape index: {}]
  %s6 = inlined_call_operand.vmem [shape: f32[2,1,128], index: 6, kind: input, shape index: {}]
  %s7 = inlined_call_operand.hbm [shape: f32[2,8,128], index: 7, kind: output, shape index: {}]
  %s8 = sld [smem:[#allocation0]]
  $region77: #{tpu_custom_call.1} parent=0
    _
  %s10 = ssub.s32 1, %s8
  %s11 = scalar_select 0, %s10, %s8
  $region1: #{tpu_custom_call.1} parent=0
    #allocation4 [shape = 'u8[8192]{0}', space=vmem, size = 0x2000, scoped, tag = 'input window, operand 0']
    #allocation5 [shape = 's32[2]{0}', space=sflag, size = 0x8, scoped, tag = 'scoped memory for tpu_custom_call.1']
    #allocation6 [shape = 's32[2]{0}', space=sflag, size = 0x8, scoped, tag = 'scoped memory for tpu_custom_call.1']
    #allocation7 [shape = 'u8[262144]{0}', space=vmem, size = 0x40000, scoped, tag = 'input window, operand 1, single buffered']
    #allocation8 [shape = 's32[1]{0}', space=sflag, size = 0x4, scoped, tag = 'scoped memory for tpu_custom_call.1']
    #allocation9 [shape = 'u8[262144]{0}', space=vmem, size = 0x40000, scoped, tag = 'input window, operand 3, single buffered']
    #allocation10 [shape = 'u8[131072]{0}', space=vmem, size = 0x20000, scoped, tag = 'input window, operand 5, single buffered']
    #allocation11 [shape = 's32[1]{0}', space=sflag, size = 0x4, scoped, tag = 'scoped memory for tpu_custom_call.1']
    #allocation12 [shape = 'u8[8192]{0}', space=vmem, size = 0x2000, scoped, tag = 'output window, operand 0']
    %12 = vsyncpa [#allocation5], 0
    %s13 = scalar_lea.sflag [#allocation5], 1
    %14 = vsyncpa %s13, 0
    %15 = vsyncpa [#allocation8], 0
    %16 = vsyncpa [#allocation11], 0
    %17 = vsyncpa [#allocation6], 0
    %s18 = scalar_lea.sflag [#allocation6], 1
    %19 = vsyncpa %s18, 0
    loop: start=0, step=1, limit=4
    $region2: #{tpu_custom_call.1} parent=1 // loop_pre_header
      _
    $region3: #{tpu_custom_call.1} parent=1 // loop_header
      %s21 = sphi 0, %s25
      %p22 = scmp.ge.s32.totalorder %s21, 4
      %s31 = sphi 0, %s33
      %s34 = sphi 0, %s31
      %s35 = sphi 0, %s34
      %s51 = sphi 0, %s35
      %s55 = sphi 0, %s55
      %s57 = sphi 0, %s55
      %s58 = sphi 0, %s57
      %s72 = sphi 0, %s58
      %s76 = sphi 0, %s76
      %s78 = sphi 0, %s76
      %s79 = sphi 0, %s78
      %s93 = sphi 0, %s79
      %s97 = sphi 0, %s97
      %s99 = sphi 0, %s97
      %s100 = sphi 0, %s99
      %s114 = sphi 0, %s100
      %s118 = sphi 0, %s118
      %s120 = sphi 0, %s118
      %s121 = sphi 0, %s120
      %s135 = sphi 0, %s121
      %s139 = sphi 0, %s139
      %s141 = sphi 0, %s139
      %s142 = sphi 0, %s141
      %s156 = sphi 0, %s142
      %s160 = sphi 0, %s160
      %s162 = sphi 0, %s160
      %s163 = sphi 0, %s162
      %s177 = sphi 0, %s163
      %s183 = sphi 0, %s185
      %s186 = sphi 0, %s183
      %s187 = sphi 0, %s186
      %s203 = sphi 0, %s187
    $region4: #{tpu_custom_call.1} parent=1 // loop_header_branch
      %24 = sbr.rel (%p22) target = $region8
    $region5: #{tpu_custom_call.1} parent=1 // loop_body
      %s26 = ssub.s32 %s21, 1
      %s27 = ssub.s32 %s21, 2
      %s28 = sadd.s32 %s21, 1
      %s29 = ssub.s32 %s21, %s28
      %p30 = scmp.eq.s32.totalorder %s29, 0
      %s32 = sadd.s32 %s31, 1
      %s33 = scalar_select %p30, %s31, %s32
      %p36 = pneg %p30
      %p37 = scmp.eq.s32.totalorder %s21, 1
      %p38 = por %p36, %p37
      %p39 = scmp.ne.s32.totalorder %s31, %s34
      %p40 = scmp.eq.s32.totalorder %s21, 0
      %p41 = por %p39, %p40
      %p42 = scmp.ne.s32.totalorder %s31, %s34
      %p43 = scmp.eq.s32.totalorder %s26, 1
      %p44 = por %p42, %p43
      %p45 = scmp.ne.s32.totalorder %s34, %s35
      %p46 = scmp.eq.s32.totalorder %s26, 0
      %p47 = por %p45, %p46
      %p48 = scmp.ne.s32.totalorder %s34, %s35
      %p49 = scmp.eq.s32.totalorder %s27, 1
      %p50 = por %p48, %p49
      %p52 = scmp.ne.s32.totalorder %s35, %s51
      %p53 = scmp.eq.s32.totalorder %s27, 0
      %p54 = por %p52, %p53
      %s56 = sadd.s32 %s55, 1
      %p59 = scmp.eq.s32.totalorder %s21, 1
      %p60 = scmp.ne.s32.totalorder %s55, %s57
      %p61 = scmp.eq.s32.totalorder %s21, 0
      %p62 = por %p60, %p61
      %p63 = scmp.ne.s32.totalorder %s55, %s57
      %p64 = scmp.eq.s32.totalorder %s26, 1
      %p65 = por %p63, %p64
      %p66 = scmp.ne.s32.totalorder %s57, %s58
      %p67 = scmp.eq.s32.totalorder %s26, 0
      %p68 = por %p66, %p67
      %p69 = scmp.ne.s32.totalorder %s57, %s58
      %p70 = scmp.eq.s32.totalorder %s27, 1
      %p71 = por %p69, %p70
      %p73 = scmp.ne.s32.totalorder %s58, %s72
      %p74 = scmp.eq.s32.totalorder %s27, 0
      %p75 = por %p73, %p74
      %s77 = sadd.s32 %s76, 1
      %p80 = scmp.eq.s32.totalorder %s21, 1
      %p81 = scmp.ne.s32.totalorder %s76, %s78
      %p82 = scmp.eq.s32.totalorder %s21, 0
      %p83 = por %p81, %p82
      %p84 = scmp.ne.s32.totalorder %s76, %s78
      %p85 = scmp.eq.s32.totalorder %s26, 1
      %p86 = por %p84, %p85
      %p87 = scmp.ne.s32.totalorder %s78, %s79
      %p88 = scmp.eq.s32.totalorder %s26, 0
      %p89 = por %p87, %p88
      %p90 = scmp.ne.s32.totalorder %s78, %s79
      %p91 = scmp.eq.s32.totalorder %s27, 1
      %p92 = por %p90, %p91
      %p94 = scmp.ne.s32.totalorder %s79, %s93
      %p95 = scmp.eq.s32.totalorder %s27, 0
      %p96 = por %p94, %p95
      %s98 = sadd.s32 %s97, 1
      %p101 = scmp.eq.s32.totalorder %s21, 1
      %p102 = scmp.ne.s32.totalorder %s97, %s99
      %p103 = scmp.eq.s32.totalorder %s21, 0
      %p104 = por %p102, %p103
      %p105 = scmp.ne.s32.totalorder %s97, %s99
      %p106 = scmp.eq.s32.totalorder %s26, 1
      %p107 = por %p105, %p106
      %p108 = scmp.ne.s32.totalorder %s99, %s100
      %p109 = scmp.eq.s32.totalorder %s26, 0
      %p110 = por %p108, %p109
      %p111 = scmp.ne.s32.totalorder %s99, %s100
      %p112 = scmp.eq.s32.totalorder %s27, 1
      %p113 = por %p111, %p112
      %p115 = scmp.ne.s32.totalorder %s100, %s114
      %p116 = scmp.eq.s32.totalorder %s27, 0
      %p117 = por %p115, %p116
      %s119 = sadd.s32 %s118, 1
      %p122 = scmp.eq.s32.totalorder %s21, 1
      %p123 = scmp.ne.s32.totalorder %s118, %s120
      %p124 = scmp.eq.s32.totalorder %s21, 0
      %p125 = por %p123, %p124
      %p126 = scmp.ne.s32.totalorder %s118, %s120
      %p127 = scmp.eq.s32.totalorder %s26, 1
      %p128 = por %p126, %p127
      %p129 = scmp.ne.s32.totalorder %s120, %s121
      %p130 = scmp.eq.s32.totalorder %s26, 0
      %p131 = por %p129, %p130
      %p132 = scmp.ne.s32.totalorder %s120, %s121
      %p133 = scmp.eq.s32.totalorder %s27, 1
      %p134 = por %p132, %p133
      %p136 = scmp.ne.s32.totalorder %s121, %s135
      %p137 = scmp.eq.s32.totalorder %s27, 0
      %p138 = por %p136, %p137
      %s140 = sadd.s32 %s139, 1
      %p143 = scmp.eq.s32.totalorder %s21, 1
      %p144 = scmp.ne.s32.totalorder %s139, %s141
      %p145 = scmp.eq.s32.totalorder %s21, 0
      %p146 = por %p144, %p145
      %p147 = scmp.ne.s32.totalorder %s139, %s141
      %p148 = scmp.eq.s32.totalorder %s26, 1
      %p149 = por %p147, %p148
      %p150 = scmp.ne.s32.totalorder %s141, %s142
      %p151 = scmp.eq.s32.totalorder %s26, 0
      %p152 = por %p150, %p151
      %p153 = scmp.ne.s32.totalorder %s141, %s142
      %p154 = scmp.eq.s32.totalorder %s27, 1
      %p155 = por %p153, %p154
      %p157 = scmp.ne.s32.totalorder %s142, %s156
      %p158 = scmp.eq.s32.totalorder %s27, 0
      %p159 = por %p157, %p158
      %s161 = sadd.s32 %s160, 1
      %p164 = scmp.eq.s32.totalorder %s21, 1
      %p165 = scmp.ne.s32.totalorder %s160, %s162
      %p166 = scmp.eq.s32.totalorder %s21, 0
      %p167 = por %p165, %p166
      %p168 = scmp.ne.s32.totalorder %s160, %s162
      %p169 = scmp.eq.s32.totalorder %s26, 1
      %p170 = por %p168, %p169
      %p171 = scmp.ne.s32.totalorder %s162, %s163
      %p172 = scmp.eq.s32.totalorder %s26, 0
      %p173 = por %p171, %p172
      %p174 = scmp.ne.s32.totalorder %s162, %s163
      %p175 = scmp.eq.s32.totalorder %s27, 1
      %p176 = por %p174, %p175
      %p178 = scmp.ne.s32.totalorder %s163, %s177
      %p179 = scmp.eq.s32.totalorder %s27, 0
      %p180 = por %p178, %p179
      %s181 = ssub.s32 %s21, %s28
      %p182 = scmp.eq.s32.totalorder %s181, 0
      %s184 = sadd.s32 %s183, 1
      %s185 = scalar_select %p182, %s183, %s184
      %p188 = pneg %p182
      %p189 = scmp.eq.s32.totalorder %s21, 1
      %p190 = por %p188, %p189
      %p191 = scmp.ne.s32.totalorder %s183, %s186
      %p192 = scmp.eq.s32.totalorder %s21, 0
      %p193 = por %p191, %p192
      %p194 = scmp.ne.s32.totalorder %s183, %s186
      %p195 = scmp.eq.s32.totalorder %s26, 1
      %p196 = por %p194, %p195
      %p197 = scmp.ne.s32.totalorder %s186, %s187
      %p198 = scmp.eq.s32.totalorder %s26, 0
      %p199 = por %p197, %p198
      %p200 = scmp.ne.s32.totalorder %s186, %s187
      %p201 = scmp.eq.s32.totalorder %s27, 1
      %p202 = por %p200, %p201
      %p204 = scmp.ne.s32.totalorder %s187, %s203
      %p205 = scmp.eq.s32.totalorder %s27, 0
      %p206 = por %p204, %p205
      %p207 = scmp.le.s32.totalorder 1, %s21
      %p208 = scmp.lt.s32.totalorder %s21, 3
      %p209 = pnand %p207, %p208
      %p210 = pneg %p209
      // Predicated region
      $region9: #{tpu_custom_call.1} parent=5 // pred_check
        _
      $region10: #{tpu_custom_call.1} parent=5 // pred_check_branch
        %212 = sbr.rel (%p209) target = $region12
      $region11: #{tpu_custom_call.1} parent=5 // pred_region
        %s213 = ssub.s32 %s21, 1
        // Predicated region
        $region13: #{tpu_custom_call.1} parent=11 // pred_check
          %p214 = pneg %p68
        $region14: #{tpu_custom_call.1} parent=11 // pred_check_branch
          %216 = sbr.rel (%p214) target = $region16
        $region15: #{tpu_custom_call.1} parent=11 // pred_region
          %s218 = ssub.s32 8192, 8192
          %219 = vsyncadd [#allocation8], %s218
          %s220 = sshll.u32 [#allocation7], 4
          %s221 = int_to_ptr.vmem [resolvable:$true] %s220
          %226 = dma.hbm_to_vmem [thread:$0]  %s1, 8192, %s221, [#allocation8], 128, 128, 8
        $region16: #{tpu_custom_call.1} parent=11 // pred_fallthru
          _
        // Predicated region
        $region17: #{tpu_custom_call.1} parent=11 // pred_check
          %p227 = pneg %p89
        $region18: #{tpu_custom_call.1} parent=11 // pred_check_branch
          %229 = sbr.rel (%p227) target = $region20
        $region19: #{tpu_custom_call.1} parent=11 // pred_region
          _
        $region20: #{tpu_custom_call.1} parent=11 // pred_fallthru
          _
        // Predicated region
        $region21: #{tpu_custom_call.1} parent=11 // pred_check
          %p230 = pneg %p110
        $region22: #{tpu_custom_call.1} parent=11 // pred_check_branch
          %232 = sbr.rel (%p230) target = $region24
        $region23: #{tpu_custom_call.1} parent=11 // pred_region
          %s234 = ssub.s32 8192, 8192
          %235 = vsyncadd [#allocation8], %s234
          %s236 = sshll.u32 [#allocation9], 4
          %s237 = int_to_ptr.vmem [resolvable:$true] %s236
          %242 = dma.hbm_to_vmem [thread:$0]  %s3, 8192, %s237, [#allocation8], 128, 128, 8
        $region24: #{tpu_custom_call.1} parent=11 // pred_fallthru
          _
        // Predicated region
        $region25: #{tpu_custom_call.1} parent=11 // pred_check
          %p243 = pneg %p131
        $region26: #{tpu_custom_call.1} parent=11 // pred_check_branch
          %245 = sbr.rel (%p243) target = $region28
        $region27: #{tpu_custom_call.1} parent=11 // pred_region
          _
        $region28: #{tpu_custom_call.1} parent=11 // pred_fallthru
          _
        // Predicated region
        $region29: #{tpu_custom_call.1} parent=11 // pred_check
          %p246 = pneg %p152
        $region30: #{tpu_custom_call.1} parent=11 // pred_check_branch
          %248 = sbr.rel (%p246) target = $region32
        $region31: #{tpu_custom_call.1} parent=11 // pred_region
          %s250 = ssub.s32 4096, 4096
          %251 = vsyncadd [#allocation11], %s250
          %s252 = sshll.u32 [#allocation10], 4
          %s253 = int_to_ptr.vmem [resolvable:$true] %s252
          %258 = dma.hbm_to_vmem [thread:$0]  %s5, 4096, %s253, [#allocation11], 128, 128, 8
        $region32: #{tpu_custom_call.1} parent=11 // pred_fallthru
          _
        // Predicated region
        $region33: #{tpu_custom_call.1} parent=11 // pred_check
          %p259 = pneg %p173
        $region34: #{tpu_custom_call.1} parent=11 // pred_check_branch
          %261 = sbr.rel (%p259) target = $region36
        $region35: #{tpu_custom_call.1} parent=11 // pred_region
          _
        $region36: #{tpu_custom_call.1} parent=11 // pred_fallthru
          _
      $region12: #{tpu_custom_call.1} parent=5 // pred_fallthru
        _
      %p262 = scmp.lt.s32.totalorder %s21, 2
      // Predicated region
      $region37: #{tpu_custom_call.1} parent=5 // pred_check
        %p263 = pneg %p262
      $region38: #{tpu_custom_call.1} parent=5 // pred_check_branch
        %265 = sbr.rel (%p263) target = $region40
      $region39: #{tpu_custom_call.1} parent=5 // pred_region
        // Predicated region
        $region41: #{tpu_custom_call.1} parent=39 // pred_check
          %p266 = pneg %p41
        $region42: #{tpu_custom_call.1} parent=39 // pred_check_branch
          %268 = sbr.rel (%p266) target = $region44
        $region43: #{tpu_custom_call.1} parent=39 // pred_region
          %s269 = sand.u32 %s31, 1
          %s270 = scalar_lea.sflag [#allocation5], %s269
          %s271 = sand.u32 %s31, 1
          %s272 = smul.addr %s271, 8
          %s273 = scalar_lea.vmem [#allocation4], %s272
          %s275 = ssub.s32 128, 128
          %276 = vsyncadd %s270, %s275
          %s277 = smul.addr %s21, 128
          %s278 = scalar_lea.hbm %s0, %s277
          %s280 = sshll.u32 %s273, 4
          %s281 = int_to_ptr.vmem [resolvable:$true] %s280
          %283 = dma.hbm_to_vmem [thread:$0]  %s278, 128, %s281, %s270
        $region44: #{tpu_custom_call.1} parent=39 // pred_fallthru
          _
      $region40: #{tpu_custom_call.1} parent=5 // pred_fallthru
        _
      %p284 = scmp.le.s32.totalorder 1, %s21
      %p285 = scmp.lt.s32.totalorder %s21, 3
      %p286 = pnand %p284, %p285
      %p287 = pneg %p286
      // Predicated region
      $region45: #{tpu_custom_call.1} parent=5 // pred_check
        _
      $region46: #{tpu_custom_call.1} parent=5 // pred_check_branch
        %289 = sbr.rel (%p286) target = $region48
      $region47: #{tpu_custom_call.1} parent=5 // pred_region
        %s290 = ssub.s32 %s21, 1
        %s291 = sand.u32 %s34, 1
        %s292 = scalar_lea.sflag [#allocation5], %s291
        %s293 = sand.u32 %s34, 1
        %s294 = smul.addr %s293, 8
        %s295 = scalar_lea.vmem [#allocation4], %s294
        // Predicated region
        $region49: #{tpu_custom_call.1} parent=47 // pred_check
          %p296 = pneg %p47
        $region50: #{tpu_custom_call.1} parent=47 // pred_check_branch
          %298 = sbr.rel (%p296) target = $region52
        $region51: #{tpu_custom_call.1} parent=47 // pred_region
          %299 = dma.done %s292, 128
        $region52: #{tpu_custom_call.1} parent=47 // pred_fallthru
          _
        // Predicated region
        $region53: #{tpu_custom_call.1} parent=47 // pred_check
          %p300 = pneg %p68
        $region54: #{tpu_custom_call.1} parent=47 // pred_check_branch
          %302 = sbr.rel (%p300) target = $region56
        $region55: #{tpu_custom_call.1} parent=47 // pred_region
          %303 = dma.done [#allocation8], 8192
        $region56: #{tpu_custom_call.1} parent=47 // pred_fallthru
          _
        // Predicated region
        $region57: #{tpu_custom_call.1} parent=47 // pred_check
          %p304 = pneg %p110
        $region58: #{tpu_custom_call.1} parent=47 // pred_check_branch
          %306 = sbr.rel (%p304) target = $region60
        $region59: #{tpu_custom_call.1} parent=47 // pred_region
          %307 = dma.done [#allocation8], 8192
        $region60: #{tpu_custom_call.1} parent=47 // pred_fallthru
          _
        // Predicated region
        $region61: #{tpu_custom_call.1} parent=47 // pred_check
          %p308 = pneg %p152
        $region62: #{tpu_custom_call.1} parent=47 // pred_check_branch
          %310 = sbr.rel (%p308) target = $region64
        $region63: #{tpu_custom_call.1} parent=47 // pred_region
          %311 = dma.done [#allocation11], 4096
        $region64: #{tpu_custom_call.1} parent=47 // pred_fallthru
          _
        %s312 = sand.u32 %s34, 1
        %s313 = scalar_lea.sflag [#allocation5], %s312
        %s314 = sand.u32 %s34, 1
        %s315 = smul.addr %s314, 8
        %s316 = scalar_lea.vmem [#allocation4], %s315
        %p317 = pneg %p47
        %p318 = pneg %p44
        %p319 = pneg %p68
        %p320 = pneg %p65
        %p321 = pneg %p89
        %p322 = pneg %p86
        %p323 = pneg %p110
        %p324 = pneg %p107
        %p325 = pneg %p131
        %p326 = pneg %p128
        %p327 = pneg %p152
        %p328 = pneg %p149
        %p329 = pneg %p173
        %p330 = pneg %p170
        %p331 = pneg %p199
        %p332 = pneg %p196
        %s333 = sand.u32 %s186, 1
        %s334 = scalar_lea.sflag [#allocation6], %s333
        %s335 = sand.u32 %s186, 1
        %s336 = smul.addr %s335, 8
        %s337 = scalar_lea.vmem [#allocation12], %s336
        %338 = vst [vmem:[#allocation2] sm:$0xff] 0.0
        %339 = vst [vmem:[#allocation3] sm:$0xff] 0.0
        %v340 = vld [vmem:[%s295] sm:$0xff]
        %341 = vst [vmem:[#allocation2 + $0x8] sm:$0xff] %v340
        %v342 = vld [vmem:[#allocation2 + $0x7] sm:$0xff]
        %v343 = vld [vmem:[#allocation7] sm:$0xff]
        %v344 = vld [vmem:[#allocation7 + $0x8] sm:$0xff]
        %v345 = vld [vmem:[#allocation7 + $0x10] sm:$0xff]
        %v346 = vld [vmem:[#allocation7 + $0x18] sm:$0xff]
        %v347 = vld [vmem:[#allocation7 + $0x20] sm:$0xff]
        %v348 = vld [vmem:[#allocation7 + $0x28] sm:$0xff]
        %v349 = vld [vmem:[#allocation7 + $0x30] sm:$0xff]
        %v350 = vld [vmem:[#allocation7 + $0x38] sm:$0xff]
        %v351 = vld [vmem:[#allocation7 + $0x40] sm:$0xff]
        %v352 = vld [vmem:[#allocation7 + $0x48] sm:$0xff]
        %v353 = vld [vmem:[#allocation7 + $0x50] sm:$0xff]
        %v354 = vld [vmem:[#allocation7 + $0x58] sm:$0xff]
        %v355 = vld [vmem:[#allocation7 + $0x60] sm:$0xff]
        %v356 = vld [vmem:[#allocation7 + $0x68] sm:$0xff]
        %v357 = vld [vmem:[#allocation7 + $0x70] sm:$0xff]
        %v358 = vld [vmem:[#allocation7 + $0x78] sm:$0xff]
        %v359 = vld [vmem:[#allocation2 + $0x8] sm:$0xff]
        %v360 = vld [vmem:[#allocation7 + $0x80] sm:$0xff]
        %v361 = vld [vmem:[#allocation7 + $0x88] sm:$0xff]
        %v362 = vld [vmem:[#allocation7 + $0x90] sm:$0xff]
        %v363 = vld [vmem:[#allocation7 + $0x98] sm:$0xff]
        %v364 = vld [vmem:[#allocation7 + $0xa0] sm:$0xff]
        %v365 = vld [vmem:[#allocation7 + $0xa8] sm:$0xff]
        %v366 = vld [vmem:[#allocation7 + $0xb0] sm:$0xff]
        %v367 = vld [vmem:[#allocation7 + $0xb8] sm:$0xff]
        %v368 = vld [vmem:[#allocation7 + $0xc0] sm:$0xff]
        %v369 = vld [vmem:[#allocation7 + $0xc8] sm:$0xff]
        %v370 = vld [vmem:[#allocation7 + $0xd0] sm:$0xff]
        %v371 = vld [vmem:[#allocation7 + $0xd8] sm:$0xff]
        %v372 = vld [vmem:[#allocation7 + $0xe0] sm:$0xff]
        %v373 = vld [vmem:[#allocation7 + $0xe8] sm:$0xff]
        %v374 = vld [vmem:[#allocation7 + $0xf0] sm:$0xff]
        %v375 = vld [vmem:[#allocation7 + $0xf8] sm:$0xff]
        %376 = vmatprep.subr.mxu0 0.0
        %377 = vmatpush1.msra.mxu0 %v360
        %378 = vmatprep.subr.mxu0 0.0
        %379 = vmatpush1.msra.mxu0 %v361
        %380 = vmatprep.subr.mxu0 0.0
        %381 = vmatpush1.msra.mxu0 %v362
        %382 = vmatprep.subr.mxu0 0.0
        %383 = vmatpush1.msra.mxu0 %v363
        %384 = vmatprep.subr.mxu0 0.0
        %385 = vmatpush1.msra.mxu0 %v364
        %386 = vmatprep.subr.mxu0 0.0
        %387 = vmatpush1.msra.mxu0 %v365
        %388 = vmatprep.subr.mxu0 0.0
        %389 = vmatpush1.msra.mxu0 %v366
        %390 = vmatprep.subr.mxu0 0.0
        %391 = vmatpush1.msra.mxu0 %v367
        %392 = vmatprep.subr.mxu0 0.0
        %393 = vmatpush1.msra.mxu0 %v368
        %394 = vmatprep.subr.mxu0 0.0
        %395 = vmatpush1.msra.mxu0 %v369
        %396 = vmatprep.subr.mxu0 0.0
        %397 = vmatpush1.msra.mxu0 %v370
        %398 = vmatprep.subr.mxu0 0.0
        %399 = vmatpush1.msra.mxu0 %v371
        %400 = vmatprep.subr.mxu0 0.0
        %401 = vmatpush1.msra.mxu0 %v372
        %402 = vmatprep.subr.mxu0 0.0
        %403 = vmatpush1.msra.mxu0 %v373
        %404 = vmatprep.subr.mxu0 0.0
        %405 = vmatpush1.msra.mxu0 %v374
        %406 = vmatprep.subr.mxu0 0.0
        %407 = vmatpush1.msra.mxu0 %v375
        %408 = vmatprep.subr.mxu0 0.0
        %409 = vmatpush1.msra.mxu0 0.0
        %410 = vmatprep.subr.mxu0 0.0
        %411 = vmatpush1.msra.mxu0 0.0
        %412 = vmatprep.subr.mxu0 0.0
        %413 = vmatpush1.msra.mxu0 0.0
        %414 = vmatprep.subr.mxu0 0.0
        %415 = vmatpush1.msra.mxu0 0.0
        %416 = vmatprep.subr.mxu0 0.0
        %417 = vmatpush1.msra.mxu0 0.0
        %418 = vmatprep.subr.mxu0 0.0
        %419 = vmatpush1.msra.mxu0 0.0
        %420 = vmatprep.subr.mxu0 0.0
        %421 = vmatpush1.msra.mxu0 0.0
        %422 = vmatprep.subr.mxu0 0.0
        %423 = vmatpush1.msra.mxu0 0.0
        %424 = vmatprep.subr.mxu0 0.0
        %425 = vmatpush1.msra.mxu0 0.0
        %426 = vmatprep.subr.mxu0 0.0
        %427 = vmatpush1.msra.mxu0 0.0
        %428 = vmatprep.subr.mxu0 0.0
        %429 = vmatpush1.msra.mxu0 0.0
        %430 = vmatprep.subr.mxu0 0.0
        %431 = vmatpush1.msra.mxu0 0.0
        %432 = vmatprep.subr.mxu0 0.0
        %433 = vmatpush1.msra.mxu0 0.0
        %434 = vmatprep.subr.mxu0 0.0
        %435 = vmatpush1.msra.mxu0 0.0
        %436 = vmatprep.subr.mxu0 0.0
        %437 = vmatpush1.msra.mxu0 0.0
        %438 = vmatprep.subr.mxu0 0.0
        %439 = vmatpush1.msra.mxu0 0.0
        %440 = vmatprep.mubr.f32.mxu0 0.0
        %441 = vmatmul.mubr.f32.gmra.mrb[0].mxu0 %v359
        %v442 = vpop.f32.mrb[0].mxu0
        %v443 = vadd.f32 0.0, %v442
        %v444 = vpop.f32.mrb[0].mxu0
        %445 = vdwg.mxu0
        %446 = vmatprep.subr.mxu0 0.0
        %447 = vmatpush1.msra.mxu0 %v343
        %448 = vmatprep.subr.mxu0 0.0
        %449 = vmatpush1.msra.mxu0 %v344
        %450 = vmatprep.subr.mxu0 0.0
        %451 = vmatpush1.msra.mxu0 %v345
        %452 = vmatprep.subr.mxu0 0.0
        %453 = vmatpush1.msra.mxu0 %v346
        %454 = vmatprep.subr.mxu0 0.0
        %455 = vmatpush1.msra.mxu0 %v347
        %456 = vmatprep.subr.mxu0 0.0
        %457 = vmatpush1.msra.mxu0 %v348
        %458 = vmatprep.subr.mxu0 0.0
        %459 = vmatpush1.msra.mxu0 %v349
        %460 = vmatprep.subr.mxu0 0.0
        %461 = vmatpush1.msra.mxu0 %v350
        %462 = vmatprep.subr.mxu0 0.0
        %463 = vmatpush1.msra.mxu0 %v351
        %464 = vmatprep.subr.mxu0 0.0
        %465 = vmatpush1.msra.mxu0 %v352
        %466 = vmatprep.subr.mxu0 0.0
        %467 = vmatpush1.msra.mxu0 %v353
        %468 = vmatprep.subr.mxu0 0.0
        %469 = vmatpush1.msra.mxu0 %v354
        %470 = vmatprep.subr.mxu0 0.0
        %471 = vmatpush1.msra.mxu0 %v355
        %472 = vmatprep.subr.mxu0 0.0
        %473 = vmatpush1.msra.mxu0 %v356
        %474 = vmatprep.subr.mxu0 0.0
        %475 = vmatpush1.msra.mxu0 %v357
        %476 = vmatprep.subr.mxu0 0.0
        %477 = vmatpush1.msra.mxu0 %v358
        %478 = vmatprep.subr.mxu0 0.0
        %479 = vmatpush1.msra.mxu0 0.0
        %480 = vmatprep.subr.mxu0 0.0
        %481 = vmatpush1.msra.mxu0 0.0
        %482 = vmatprep.subr.mxu0 0.0
        %483 = vmatpush1.msra.mxu0 0.0
        %484 = vmatprep.subr.mxu0 0.0
        %485 = vmatpush1.msra.mxu0 0.0
        %486 = vmatprep.subr.mxu0 0.0
        %487 = vmatpush1.msra.mxu0 0.0
        %488 = vmatprep.subr.mxu0 0.0
        %489 = vmatpush1.msra.mxu0 0.0
        %490 = vmatprep.subr.mxu0 0.0
        %491 = vmatpush1.msra.mxu0 0.0
        %492 = vmatprep.subr.mxu0 0.0
        %493 = vmatpush1.msra.mxu0 0.0
        %494 = vmatprep.subr.mxu0 0.0
        %495 = vmatpush1.msra.mxu0 0.0
        %496 = vmatprep.subr.mxu0 0.0
        %497 = vmatpush1.msra.mxu0 0.0
        %498 = vmatprep.subr.mxu0 0.0
        %499 = vmatpush1.msra.mxu0 0.0
        %500 = vmatprep.subr.mxu0 0.0
        %501 = vmatpush1.msra.mxu0 0.0
        %502 = vmatprep.subr.mxu0 0.0
        %503 = vmatpush1.msra.mxu0 0.0
        %504 = vmatprep.subr.mxu0 0.0
        %505 = vmatpush1.msra.mxu0 0.0
        %506 = vmatprep.subr.mxu0 0.0
        %507 = vmatpush1.msra.mxu0 0.0
        %508 = vmatprep.subr.mxu0 0.0
        %509 = vmatpush1.msra.mxu0 0.0
        %510 = vmatprep.mubr.f32.mxu0 0.0
        %511 = vmatmul.mubr.f32.gmra.mrb[0].mxu0 %v342
        %v512 = vpop.f32.mrb[0].mxu0
        %v513 = vadd.f32 %v443, %v512
        %v514 = vpop.f32.mrb[0].mxu0
        %515 = vdwg.mxu0
        %v516 = vld [vmem:[%s2] sm:$0x1]
        %v518 = vlaneseq
        %v519 = vshrl.u32 %v518, 7
        %v520 = vsub.s32 0, %v519
        %v521 = vrot.slane %v516, %v520
        %v523 = vadd.f32 %v513, %v521
        %v524 = vmax.f32 %v523, 0.0
        %525 = vst [vmem:[#allocation3 + $0x8] sm:$0xff] %v524
        %v526 = vld [vmem:[#allocation3 + $0x7] sm:$0xff]
        %v527 = vld [vmem:[#allocation9] sm:$0xff]
        %v528 = vld [vmem:[#allocation9 + $0x8] sm:$0xff]
        %v529 = vld [vmem:[#allocation9 + $0x10] sm:$0xff]
        %v530 = vld [vmem:[#allocation9 + $0x18] sm:$0xff]
        %v531 = vld [vmem:[#allocation9 + $0x20] sm:$0xff]
        %v532 = vld [vmem:[#allocation9 + $0x28] sm:$0xff]
        %v533 = vld [vmem:[#allocation9 + $0x30] sm:$0xff]
        %v534 = vld [vmem:[#allocation9 + $0x38] sm:$0xff]
        %v535 = vld [vmem:[#allocation9 + $0x40] sm:$0xff]
        %v536 = vld [vmem:[#allocation9 + $0x48] sm:$0xff]
        %v537 = vld [vmem:[#allocation9 + $0x50] sm:$0xff]
        %v538 = vld [vmem:[#allocation9 + $0x58] sm:$0xff]
        %v539 = vld [vmem:[#allocation9 + $0x60] sm:$0xff]
        %v540 = vld [vmem:[#allocation9 + $0x68] sm:$0xff]
        %v541 = vld [vmem:[#allocation9 + $0x70] sm:$0xff]
        %v542 = vld [vmem:[#allocation9 + $0x78] sm:$0xff]
        %v543 = vld [vmem:[#allocation3 + $0x8] sm:$0xff]
        %v544 = vld [vmem:[#allocation9 + $0x80] sm:$0xff]
        %v545 = vld [vmem:[#allocation9 + $0x88] sm:$0xff]
        %v546 = vld [vmem:[#allocation9 + $0x90] sm:$0xff]
        %v547 = vld [vmem:[#allocation9 + $0x98] sm:$0xff]
        %v548 = vld [vmem:[#allocation9 + $0xa0] sm:$0xff]
        %v549 = vld [vmem:[#allocation9 + $0xa8] sm:$0xff]
        %v550 = vld [vmem:[#allocation9 + $0xb0] sm:$0xff]
        %v551 = vld [vmem:[#allocation9 + $0xb8] sm:$0xff]
        %v552 = vld [vmem:[#allocation9 + $0xc0] sm:$0xff]
        %v553 = vld [vmem:[#allocation9 + $0xc8] sm:$0xff]
        %v554 = vld [vmem:[#allocation9 + $0xd0] sm:$0xff]
        %v555 = vld [vmem:[#allocation9 + $0xd8] sm:$0xff]
        %v556 = vld [vmem:[#allocation9 + $0xe0] sm:$0xff]
        %v557 = vld [vmem:[#allocation9 + $0xe8] sm:$0xff]
        %v558 = vld [vmem:[#allocation9 + $0xf0] sm:$0xff]
        %v559 = vld [vmem:[#allocation9 + $0xf8] sm:$0xff]
        %560 = vmatprep.subr.mxu0 0.0
        %561 = vmatpush1.msra.mxu0 %v544
        %562 = vmatprep.subr.mxu0 0.0
        %563 = vmatpush1.msra.mxu0 %v545
        %564 = vmatprep.subr.mxu0 0.0
        %565 = vmatpush1.msra.mxu0 %v546
        %566 = vmatprep.subr.mxu0 0.0
        %567 = vmatpush1.msra.mxu0 %v547
        %568 = vmatprep.subr.mxu0 0.0
        %569 = vmatpush1.msra.mxu0 %v548
        %570 = vmatprep.subr.mxu0 0.0
        %571 = vmatpush1.msra.mxu0 %v549
        %572 = vmatprep.subr.mxu0 0.0
        %573 = vmatpush1.msra.mxu0 %v550
        %574 = vmatprep.subr.mxu0 0.0
        %575 = vmatpush1.msra.mxu0 %v551
        %576 = vmatprep.subr.mxu0 0.0
        %577 = vmatpush1.msra.mxu0 %v552
        %578 = vmatprep.subr.mxu0 0.0
        %579 = vmatpush1.msra.mxu0 %v553
        %580 = vmatprep.subr.mxu0 0.0
        %581 = vmatpush1.msra.mxu0 %v554
        %582 = vmatprep.subr.mxu0 0.0
        %583 = vmatpush1.msra.mxu0 %v555
        %584 = vmatprep.subr.mxu0 0.0
        %585 = vmatpush1.msra.mxu0 %v556
        %586 = vmatprep.subr.mxu0 0.0
        %587 = vmatpush1.msra.mxu0 %v557
        %588 = vmatprep.subr.mxu0 0.0
        %589 = vmatpush1.msra.mxu0 %v558
        %590 = vmatprep.subr.mxu0 0.0
        %591 = vmatpush1.msra.mxu0 %v559
        %592 = vmatprep.subr.mxu0 0.0
        %593 = vmatpush1.msra.mxu0 0.0
        %594 = vmatprep.subr.mxu0 0.0
        %595 = vmatpush1.msra.mxu0 0.0
        %596 = vmatprep.subr.mxu0 0.0
        %597 = vmatpush1.msra.mxu0 0.0
        %598 = vmatprep.subr.mxu0 0.0
        %599 = vmatpush1.msra.mxu0 0.0
        %600 = vmatprep.subr.mxu0 0.0
        %601 = vmatpush1.msra.mxu0 0.0
        %602 = vmatprep.subr.mxu0 0.0
        %603 = vmatpush1.msra.mxu0 0.0
        %604 = vmatprep.subr.mxu0 0.0
        %605 = vmatpush1.msra.mxu0 0.0
        %606 = vmatprep.subr.mxu0 0.0
        %607 = vmatpush1.msra.mxu0 0.0
        %608 = vmatprep.subr.mxu0 0.0
        %609 = vmatpush1.msra.mxu0 0.0
        %610 = vmatprep.subr.mxu0 0.0
        %611 = vmatpush1.msra.mxu0 0.0
        %612 = vmatprep.subr.mxu0 0.0
        %613 = vmatpush1.msra.mxu0 0.0
        %614 = vmatprep.subr.mxu0 0.0
        %615 = vmatpush1.msra.mxu0 0.0
        %616 = vmatprep.subr.mxu0 0.0
        %617 = vmatpush1.msra.mxu0 0.0
        %618 = vmatprep.subr.mxu0 0.0
        %619 = vmatpush1.msra.mxu0 0.0
        %620 = vmatprep.subr.mxu0 0.0
        %621 = vmatpush1.msra.mxu0 0.0
        %622 = vmatprep.subr.mxu0 0.0
        %623 = vmatpush1.msra.mxu0 0.0
        %624 = vmatprep.mubr.f32.mxu0 0.0
        %625 = vmatmul.mubr.f32.gmra.mrb[0].mxu0 %v543
        %v626 = vpop.f32.mrb[0].mxu0
        %v627 = vadd.f32 0.0, %v626
        %v628 = vpop.f32.mrb[0].mxu0
        %629 = vdwg.mxu0
        %630 = vmatprep.subr.mxu0 0.0
        %631 = vmatpush1.msra.mxu0 %v527
        %632 = vmatprep.subr.mxu0 0.0
        %633 = vmatpush1.msra.mxu0 %v528
        %634 = vmatprep.subr.mxu0 0.0
        %635 = vmatpush1.msra.mxu0 %v529
        %636 = vmatprep.subr.mxu0 0.0
        %637 = vmatpush1.msra.mxu0 %v530
        %638 = vmatprep.subr.mxu0 0.0
        %639 = vmatpush1.msra.mxu0 %v531
        %640 = vmatprep.subr.mxu0 0.0
        %641 = vmatpush1.msra.mxu0 %v532
        %642 = vmatprep.subr.mxu0 0.0
        %643 = vmatpush1.msra.mxu0 %v533
        %644 = vmatprep.subr.mxu0 0.0
        %645 = vmatpush1.msra.mxu0 %v534
        %646 = vmatprep.subr.mxu0 0.0
        %647 = vmatpush1.msra.mxu0 %v535
        %648 = vmatprep.subr.mxu0 0.0
        %649 = vmatpush1.msra.mxu0 %v536
        %650 = vmatprep.subr.mxu0 0.0
        %651 = vmatpush1.msra.mxu0 %v537
        %652 = vmatprep.subr.mxu0 0.0
        %653 = vmatpush1.msra.mxu0 %v538
        %654 = vmatprep.subr.mxu0 0.0
        %655 = vmatpush1.msra.mxu0 %v539
        %656 = vmatprep.subr.mxu0 0.0
        %657 = vmatpush1.msra.mxu0 %v540
        %658 = vmatprep.subr.mxu0 0.0
        %659 = vmatpush1.msra.mxu0 %v541
        %660 = vmatprep.subr.mxu0 0.0
        %661 = vmatpush1.msra.mxu0 %v542
        %662 = vmatprep.subr.mxu0 0.0
        %663 = vmatpush1.msra.mxu0 0.0
        %664 = vmatprep.subr.mxu0 0.0
        %665 = vmatpush1.msra.mxu0 0.0
        %666 = vmatprep.subr.mxu0 0.0
        %667 = vmatpush1.msra.mxu0 0.0
        %668 = vmatprep.subr.mxu0 0.0
        %669 = vmatpush1.msra.mxu0 0.0
        %670 = vmatprep.subr.mxu0 0.0
        %671 = vmatpush1.msra.mxu0 0.0
        %672 = vmatprep.subr.mxu0 0.0
        %673 = vmatpush1.msra.mxu0 0.0
        %674 = vmatprep.subr.mxu0 0.0
        %675 = vmatpush1.msra.mxu0 0.0
        %676 = vmatprep.subr.mxu0 0.0
        %677 = vmatpush1.msra.mxu0 0.0
        %678 = vmatprep.subr.mxu0 0.0
        %679 = vmatpush1.msra.mxu0 0.0
        %680 = vmatprep.subr.mxu0 0.0
        %681 = vmatpush1.msra.mxu0 0.0
        %682 = vmatprep.subr.mxu0 0.0
        %683 = vmatpush1.msra.mxu0 0.0
        %684 = vmatprep.subr.mxu0 0.0
        %685 = vmatpush1.msra.mxu0 0.0
        %686 = vmatprep.subr.mxu0 0.0
        %687 = vmatpush1.msra.mxu0 0.0
        %688 = vmatprep.subr.mxu0 0.0
        %689 = vmatpush1.msra.mxu0 0.0
        %690 = vmatprep.subr.mxu0 0.0
        %691 = vmatpush1.msra.mxu0 0.0
        %692 = vmatprep.subr.mxu0 0.0
        %693 = vmatpush1.msra.mxu0 0.0
        %694 = vmatprep.mubr.f32.mxu0 0.0
        %695 = vmatmul.mubr.f32.gmra.mrb[0].mxu0 %v526
        %v696 = vpop.f32.mrb[0].mxu0
        %v697 = vadd.f32 %v627, %v696
        %v698 = vpop.f32.mrb[0].mxu0
        %699 = vdwg.mxu0
        %v700 = vld [vmem:[%s4] sm:$0x1]
        %v702 = vlaneseq
        %v703 = vshrl.u32 %v702, 7
        %v704 = vsub.s32 0, %v703
        %v705 = vrot.slane %v700, %v704
        %v707 = vadd.f32 %v697, %v705
        %v708 = vmax.f32 %v707, 0.0
        %v709 = vld [vmem:[#allocation2 + $0x8] sm:$0xff]
        %v710 = vadd.f32 %v708, %v709
        %v711 = vmax.f32 %v710, 0.0
        %712 = vst [vmem:[#allocation2 + $0x8] sm:$0xff] %v711
        %v713 = vld [vmem:[#allocation2 + $0x6] sm:$0xff]
        %s714 = scalar_lea.vmem [#allocation7], 256
        %v715 = vld [vmem:[%s714] sm:$0xff]
        %v716 = vld [vmem:[%s714 + $0x8] sm:$0xff]
        %v717 = vld [vmem:[%s714 + $0x10] sm:$0xff]
        %v718 = vld [vmem:[%s714 + $0x18] sm:$0xff]
        %v719 = vld [vmem:[%s714 + $0x20] sm:$0xff]
        %v720 = vld [vmem:[%s714 + $0x28] sm:$0xff]
        %v721 = vld [vmem:[%s714 + $0x30] sm:$0xff]
        %v722 = vld [vmem:[%s714 + $0x38] sm:$0xff]
        %v723 = vld [vmem:[%s714 + $0x40] sm:$0xff]
        %v724 = vld [vmem:[%s714 + $0x48] sm:$0xff]
        %v725 = vld [vmem:[%s714 + $0x50] sm:$0xff]
        %v726 = vld [vmem:[%s714 + $0x58] sm:$0xff]
        %v727 = vld [vmem:[%s714 + $0x60] sm:$0xff]
        %v728 = vld [vmem:[%s714 + $0x68] sm:$0xff]
        %v729 = vld [vmem:[%s714 + $0x70] sm:$0xff]
        %v730 = vld [vmem:[%s714 + $0x78] sm:$0xff]
        %v731 = vld [vmem:[#allocation2 + $0x8] sm:$0xff]
        %v732 = vld [vmem:[%s714 + $0x80] sm:$0xff]
        %v733 = vld [vmem:[%s714 + $0x88] sm:$0xff]
        %v734 = vld [vmem:[%s714 + $0x90] sm:$0xff]
        %v735 = vld [vmem:[%s714 + $0x98] sm:$0xff]
        %v736 = vld [vmem:[%s714 + $0xa0] sm:$0xff]
        %v737 = vld [vmem:[%s714 + $0xa8] sm:$0xff]
        %v738 = vld [vmem:[%s714 + $0xb0] sm:$0xff]
        %v739 = vld [vmem:[%s714 + $0xb8] sm:$0xff]
        %v740 = vld [vmem:[%s714 + $0xc0] sm:$0xff]
        %v741 = vld [vmem:[%s714 + $0xc8] sm:$0xff]
        %v742 = vld [vmem:[%s714 + $0xd0] sm:$0xff]
        %v743 = vld [vmem:[%s714 + $0xd8] sm:$0xff]
        %v744 = vld [vmem:[%s714 + $0xe0] sm:$0xff]
        %v745 = vld [vmem:[%s714 + $0xe8] sm:$0xff]
        %v746 = vld [vmem:[%s714 + $0xf0] sm:$0xff]
        %v747 = vld [vmem:[%s714 + $0xf8] sm:$0xff]
        %748 = vmatprep.subr.mxu0 0.0
        %749 = vmatpush1.msra.mxu0 %v732
        %750 = vmatprep.subr.mxu0 0.0
        %751 = vmatpush1.msra.mxu0 %v733
        %752 = vmatprep.subr.mxu0 0.0
        %753 = vmatpush1.msra.mxu0 %v734
        %754 = vmatprep.subr.mxu0 0.0
        %755 = vmatpush1.msra.mxu0 %v735
        %756 = vmatprep.subr.mxu0 0.0
        %757 = vmatpush1.msra.mxu0 %v736
        %758 = vmatprep.subr.mxu0 0.0
        %759 = vmatpush1.msra.mxu0 %v737
        %760 = vmatprep.subr.mxu0 0.0
        %761 = vmatpush1.msra.mxu0 %v738
        %762 = vmatprep.subr.mxu0 0.0
        %763 = vmatpush1.msra.mxu0 %v739
        %764 = vmatprep.subr.mxu0 0.0
        %765 = vmatpush1.msra.mxu0 %v740
        %766 = vmatprep.subr.mxu0 0.0
        %767 = vmatpush1.msra.mxu0 %v741
        %768 = vmatprep.subr.mxu0 0.0
        %769 = vmatpush1.msra.mxu0 %v742
        %770 = vmatprep.subr.mxu0 0.0
        %771 = vmatpush1.msra.mxu0 %v743
        %772 = vmatprep.subr.mxu0 0.0
        %773 = vmatpush1.msra.mxu0 %v744
        %774 = vmatprep.subr.mxu0 0.0
        %775 = vmatpush1.msra.mxu0 %v745
        %776 = vmatprep.subr.mxu0 0.0
        %777 = vmatpush1.msra.mxu0 %v746
        %778 = vmatprep.subr.mxu0 0.0
        %779 = vmatpush1.msra.mxu0 %v747
        %780 = vmatprep.subr.mxu0 0.0
        %781 = vmatpush1.msra.mxu0 0.0
        %782 = vmatprep.subr.mxu0 0.0
        %783 = vmatpush1.msra.mxu0 0.0
        %784 = vmatprep.subr.mxu0 0.0
        %785 = vmatpush1.msra.mxu0 0.0
        %786 = vmatprep.subr.mxu0 0.0
        %787 = vmatpush1.msra.mxu0 0.0
        %788 = vmatprep.subr.mxu0 0.0
        %789 = vmatpush1.msra.mxu0 0.0
        %790 = vmatprep.subr.mxu0 0.0
        %791 = vmatpush1.msra.mxu0 0.0
        %792 = vmatprep.subr.mxu0 0.0
        %793 = vmatpush1.msra.mxu0 0.0
        %794 = vmatprep.subr.mxu0 0.0
        %795 = vmatpush1.msra.mxu0 0.0
        %796 = vmatprep.subr.mxu0 0.0
        %797 = vmatpush1.msra.mxu0 0.0
        %798 = vmatprep.subr.mxu0 0.0
        %799 = vmatpush1.msra.mxu0 0.0
        %800 = vmatprep.subr.mxu0 0.0
        %801 = vmatpush1.msra.mxu0 0.0
        %802 = vmatprep.subr.mxu0 0.0
        %803 = vmatpush1.msra.mxu0 0.0
        %804 = vmatprep.subr.mxu0 0.0
        %805 = vmatpush1.msra.mxu0 0.0
        %806 = vmatprep.subr.mxu0 0.0
        %807 = vmatpush1.msra.mxu0 0.0
        %808 = vmatprep.subr.mxu0 0.0
        %809 = vmatpush1.msra.mxu0 0.0
        %810 = vmatprep.subr.mxu0 0.0
        %811 = vmatpush1.msra.mxu0 0.0
        %812 = vmatprep.mubr.f32.mxu0 0.0
        %813 = vmatmul.mubr.f32.gmra.mrb[0].mxu0 %v731
        %v814 = vpop.f32.mrb[0].mxu0
        %v815 = vadd.f32 0.0, %v814
        %v816 = vpop.f32.mrb[0].mxu0
        %817 = vdwg.mxu0
        %818 = vmatprep.subr.mxu0 0.0
        %819 = vmatpush1.msra.mxu0 %v715
        %820 = vmatprep.subr.mxu0 0.0
        %821 = vmatpush1.msra.mxu0 %v716
        %822 = vmatprep.subr.mxu0 0.0
        %823 = vmatpush1.msra.mxu0 %v717
        %824 = vmatprep.subr.mxu0 0.0
        %825 = vmatpush1.msra.mxu0 %v718
        %826 = vmatprep.subr.mxu0 0.0
        %827 = vmatpush1.msra.mxu0 %v719
        %828 = vmatprep.subr.mxu0 0.0
        %829 = vmatpush1.msra.mxu0 %v720
        %830 = vmatprep.subr.mxu0 0.0
        %831 = vmatpush1.msra.mxu0 %v721
        %832 = vmatprep.subr.mxu0 0.0
        %833 = vmatpush1.msra.mxu0 %v722
        %834 = vmatprep.subr.mxu0 0.0
        %835 = vmatpush1.msra.mxu0 %v723
        %836 = vmatprep.subr.mxu0 0.0
        %837 = vmatpush1.msra.mxu0 %v724
        %838 = vmatprep.subr.mxu0 0.0
        %839 = vmatpush1.msra.mxu0 %v725
        %840 = vmatprep.subr.mxu0 0.0
        %841 = vmatpush1.msra.mxu0 %v726
        %842 = vmatprep.subr.mxu0 0.0
        %843 = vmatpush1.msra.mxu0 %v727
        %844 = vmatprep.subr.mxu0 0.0
        %845 = vmatpush1.msra.mxu0 %v728
        %846 = vmatprep.subr.mxu0 0.0
        %847 = vmatpush1.msra.mxu0 %v729
        %848 = vmatprep.subr.mxu0 0.0
        %849 = vmatpush1.msra.mxu0 %v730
        %850 = vmatprep.subr.mxu0 0.0
        %851 = vmatpush1.msra.mxu0 0.0
        %852 = vmatprep.subr.mxu0 0.0
        %853 = vmatpush1.msra.mxu0 0.0
        %854 = vmatprep.subr.mxu0 0.0
        %855 = vmatpush1.msra.mxu0 0.0
        %856 = vmatprep.subr.mxu0 0.0
        %857 = vmatpush1.msra.mxu0 0.0
        %858 = vmatprep.subr.mxu0 0.0
        %859 = vmatpush1.msra.mxu0 0.0
        %860 = vmatprep.subr.mxu0 0.0
        %861 = vmatpush1.msra.mxu0 0.0
        %862 = vmatprep.subr.mxu0 0.0
        %863 = vmatpush1.msra.mxu0 0.0
        %864 = vmatprep.subr.mxu0 0.0
        %865 = vmatpush1.msra.mxu0 0.0
        %866 = vmatprep.subr.mxu0 0.0
        %867 = vmatpush1.msra.mxu0 0.0
        %868 = vmatprep.subr.mxu0 0.0
        %869 = vmatpush1.msra.mxu0 0.0
        %870 = vmatprep.subr.mxu0 0.0
        %871 = vmatpush1.msra.mxu0 0.0
        %872 = vmatprep.subr.mxu0 0.0
        %873 = vmatpush1.msra.mxu0 0.0
        %874 = vmatprep.subr.mxu0 0.0
        %875 = vmatpush1.msra.mxu0 0.0
        %876 = vmatprep.subr.mxu0 0.0
        %877 = vmatpush1.msra.mxu0 0.0
        %878 = vmatprep.subr.mxu0 0.0
        %879 = vmatpush1.msra.mxu0 0.0
        %880 = vmatprep.subr.mxu0 0.0
        %881 = vmatpush1.msra.mxu0 0.0
        %882 = vmatprep.mubr.f32.mxu0 0.0
        %883 = vmatmul.mubr.f32.gmra.mrb[0].mxu0 %v713
        %v884 = vpop.f32.mrb[0].mxu0
        %v885 = vadd.f32 %v815, %v884
        %v886 = vpop.f32.mrb[0].mxu0
        %887 = vdwg.mxu0
        %s888 = scalar_lea.vmem %s2, 1
        %v889 = vld [vmem:[%s888] sm:$0x1]
        %v891 = vlaneseq
        %v892 = vshrl.u32 %v891, 7
        %v893 = vsub.s32 0, %v892
        %v894 = vrot.slane %v889, %v893
        %v896 = vadd.f32 %v885, %v894
        %v897 = vmax.f32 %v896, 0.0
        %898 = vst [vmem:[#allocation3 + $0x8] sm:$0xff] %v897
        %v899 = vld [vmem:[#allocation3 + $0x6] sm:$0xff]
        %s900 = scalar_lea.vmem [#allocation9], 256
        %v901 = vld [vmem:[%s900] sm:$0xff]
        %v902 = vld [vmem:[%s900 + $0x8] sm:$0xff]
        %v903 = vld [vmem:[%s900 + $0x10] sm:$0xff]
        %v904 = vld [vmem:[%s900 + $0x18] sm:$0xff]
        %v905 = vld [vmem:[%s900 + $0x20] sm:$0xff]
        %v906 = vld [vmem:[%s900 + $0x28] sm:$0xff]
        %v907 = vld [vmem:[%s900 + $0x30] sm:$0xff]
        %v908 = vld [vmem:[%s900 + $0x38] sm:$0xff]
        %v909 = vld [vmem:[%s900 + $0x40] sm:$0xff]
        %v910 = vld [vmem:[%s900 + $0x48] sm:$0xff]
        %v911 = vld [vmem:[%s900 + $0x50] sm:$0xff]
        %v912 = vld [vmem:[%s900 + $0x58] sm:$0xff]
        %v913 = vld [vmem:[%s900 + $0x60] sm:$0xff]
        %v914 = vld [vmem:[%s900 + $0x68] sm:$0xff]
        %v915 = vld [vmem:[%s900 + $0x70] sm:$0xff]
        %v916 = vld [vmem:[%s900 + $0x78] sm:$0xff]
        %v917 = vld [vmem:[#allocation3 + $0x8] sm:$0xff]
        %v918 = vld [vmem:[%s900 + $0x80] sm:$0xff]
        %v919 = vld [vmem:[%s900 + $0x88] sm:$0xff]
        %v920 = vld [vmem:[%s900 + $0x90] sm:$0xff]
        %v921 = vld [vmem:[%s900 + $0x98] sm:$0xff]
        %v922 = vld [vmem:[%s900 + $0xa0] sm:$0xff]
        %v923 = vld [vmem:[%s900 + $0xa8] sm:$0xff]
        %v924 = vld [vmem:[%s900 + $0xb0] sm:$0xff]
        %v925 = vld [vmem:[%s900 + $0xb8] sm:$0xff]
        %v926 = vld [vmem:[%s900 + $0xc0] sm:$0xff]
        %v927 = vld [vmem:[%s900 + $0xc8] sm:$0xff]
        %v928 = vld [vmem:[%s900 + $0xd0] sm:$0xff]
        %v929 = vld [vmem:[%s900 + $0xd8] sm:$0xff]
        %v930 = vld [vmem:[%s900 + $0xe0] sm:$0xff]
        %v931 = vld [vmem:[%s900 + $0xe8] sm:$0xff]
        %v932 = vld [vmem:[%s900 + $0xf0] sm:$0xff]
        %v933 = vld [vmem:[%s900 + $0xf8] sm:$0xff]
        %934 = vmatprep.subr.mxu0 0.0
        %935 = vmatpush1.msra.mxu0 %v918
        %936 = vmatprep.subr.mxu0 0.0
        %937 = vmatpush1.msra.mxu0 %v919
        %938 = vmatprep.subr.mxu0 0.0
        %939 = vmatpush1.msra.mxu0 %v920
        %940 = vmatprep.subr.mxu0 0.0
        %941 = vmatpush1.msra.mxu0 %v921
        %942 = vmatprep.subr.mxu0 0.0
        %943 = vmatpush1.msra.mxu0 %v922
        %944 = vmatprep.subr.mxu0 0.0
        %945 = vmatpush1.msra.mxu0 %v923
        %946 = vmatprep.subr.mxu0 0.0
        %947 = vmatpush1.msra.mxu0 %v924
        %948 = vmatprep.subr.mxu0 0.0
        %949 = vmatpush1.msra.mxu0 %v925
        %950 = vmatprep.subr.mxu0 0.0
        %951 = vmatpush1.msra.mxu0 %v926
        %952 = vmatprep.subr.mxu0 0.0
        %953 = vmatpush1.msra.mxu0 %v927
        %954 = vmatprep.subr.mxu0 0.0
        %955 = vmatpush1.msra.mxu0 %v928
        %956 = vmatprep.subr.mxu0 0.0
        %957 = vmatpush1.msra.mxu0 %v929
        %958 = vmatprep.subr.mxu0 0.0
        %959 = vmatpush1.msra.mxu0 %v930
        %960 = vmatprep.subr.mxu0 0.0
        %961 = vmatpush1.msra.mxu0 %v931
        %962 = vmatprep.subr.mxu0 0.0
        %963 = vmatpush1.msra.mxu0 %v932
        %964 = vmatprep.subr.mxu0 0.0
        %965 = vmatpush1.msra.mxu0 %v933
        %966 = vmatprep.subr.mxu0 0.0
        %967 = vmatpush1.msra.mxu0 0.0
        %968 = vmatprep.subr.mxu0 0.0
        %969 = vmatpush1.msra.mxu0 0.0
        %970 = vmatprep.subr.mxu0 0.0
        %971 = vmatpush1.msra.mxu0 0.0
        %972 = vmatprep.subr.mxu0 0.0
        %973 = vmatpush1.msra.mxu0 0.0
        %974 = vmatprep.subr.mxu0 0.0
        %975 = vmatpush1.msra.mxu0 0.0
        %976 = vmatprep.subr.mxu0 0.0
        %977 = vmatpush1.msra.mxu0 0.0
        %978 = vmatprep.subr.mxu0 0.0
        %979 = vmatpush1.msra.mxu0 0.0
        %980 = vmatprep.subr.mxu0 0.0
        %981 = vmatpush1.msra.mxu0 0.0
        %982 = vmatprep.subr.mxu0 0.0
        %983 = vmatpush1.msra.mxu0 0.0
        %984 = vmatprep.subr.mxu0 0.0
        %985 = vmatpush1.msra.mxu0 0.0
        %986 = vmatprep.subr.mxu0 0.0
        %987 = vmatpush1.msra.mxu0 0.0
        %988 = vmatprep.subr.mxu0 0.0
        %989 = vmatpush1.msra.mxu0 0.0
        %990 = vmatprep.subr.mxu0 0.0
        %991 = vmatpush1.msra.mxu0 0.0
        %992 = vmatprep.subr.mxu0 0.0
        %993 = vmatpush1.msra.mxu0 0.0
        %994 = vmatprep.subr.mxu0 0.0
        %995 = vmatpush1.msra.mxu0 0.0
        %996 = vmatprep.subr.mxu0 0.0
        %997 = vmatpush1.msra.mxu0 0.0
        %998 = vmatprep.mubr.f32.mxu0 0.0
        %999 = vmatmul.mubr.f32.gmra.mrb[0].mxu0 %v917
        %v1000 = vpop.f32.mrb[0].mxu0
        %v1001 = vadd.f32 0.0, %v1000
        %v1002 = vpop.f32.mrb[0].mxu0
        %1003 = vdwg.mxu0
        %1004 = vmatprep.subr.mxu0 0.0
        %1005 = vmatpush1.msra.mxu0 %v901
        %1006 = vmatprep.subr.mxu0 0.0
        %1007 = vmatpush1.msra.mxu0 %v902
        %1008 = vmatprep.subr.mxu0 0.0
        %1009 = vmatpush1.msra.mxu0 %v903
        %1010 = vmatprep.subr.mxu0 0.0
        %1011 = vmatpush1.msra.mxu0 %v904
        %1012 = vmatprep.subr.mxu0 0.0
        %1013 = vmatpush1.msra.mxu0 %v905
        %1014 = vmatprep.subr.mxu0 0.0
        %1015 = vmatpush1.msra.mxu0 %v906
        %1016 = vmatprep.subr.mxu0 0.0
        %1017 = vmatpush1.msra.mxu0 %v907
        %1018 = vmatprep.subr.mxu0 0.0
        %1019 = vmatpush1.msra.mxu0 %v908
        %1020 = vmatprep.subr.mxu0 0.0
        %1021 = vmatpush1.msra.mxu0 %v909
        %1022 = vmatprep.subr.mxu0 0.0
        %1023 = vmatpush1.msra.mxu0 %v910
        %1024 = vmatprep.subr.mxu0 0.0
        %1025 = vmatpush1.msra.mxu0 %v911
        %1026 = vmatprep.subr.mxu0 0.0
        %1027 = vmatpush1.msra.mxu0 %v912
        %1028 = vmatprep.subr.mxu0 0.0
        %1029 = vmatpush1.msra.mxu0 %v913
        %1030 = vmatprep.subr.mxu0 0.0
        %1031 = vmatpush1.msra.mxu0 %v914
        %1032 = vmatprep.subr.mxu0 0.0
        %1033 = vmatpush1.msra.mxu0 %v915
        %1034 = vmatprep.subr.mxu0 0.0
        %1035 = vmatpush1.msra.mxu0 %v916
        %1036 = vmatprep.subr.mxu0 0.0
        %1037 = vmatpush1.msra.mxu0 0.0
        %1038 = vmatprep.subr.mxu0 0.0
        %1039 = vmatpush1.msra.mxu0 0.0
        %1040 = vmatprep.subr.mxu0 0.0
        %1041 = vmatpush1.msra.mxu0 0.0
        %1042 = vmatprep.subr.mxu0 0.0
        %1043 = vmatpush1.msra.mxu0 0.0
        %1044 = vmatprep.subr.mxu0 0.0
        %1045 = vmatpush1.msra.mxu0 0.0
        %1046 = vmatprep.subr.mxu0 0.0
        %1047 = vmatpush1.msra.mxu0 0.0
        %1048 = vmatprep.subr.mxu0 0.0
        %1049 = vmatpush1.msra.mxu0 0.0
        %1050 = vmatprep.subr.mxu0 0.0
        %1051 = vmatpush1.msra.mxu0 0.0
        %1052 = vmatprep.subr.mxu0 0.0
        %1053 = vmatpush1.msra.mxu0 0.0
        %1054 = vmatprep.subr.mxu0 0.0
        %1055 = vmatpush1.msra.mxu0 0.0
        %1056 = vmatprep.subr.mxu0 0.0
        %1057 = vmatpush1.msra.mxu0 0.0
        %1058 = vmatprep.subr.mxu0 0.0
        %1059 = vmatpush1.msra.mxu0 0.0
        %1060 = vmatprep.subr.mxu0 0.0
        %1061 = vmatpush1.msra.mxu0 0.0
        %1062 = vmatprep.subr.mxu0 0.0
        %1063 = vmatpush1.msra.mxu0 0.0
        %1064 = vmatprep.subr.mxu0 0.0
        %1065 = vmatpush1.msra.mxu0 0.0
        %1066 = vmatprep.subr.mxu0 0.0
        %1067 = vmatpush1.msra.mxu0 0.0
        %1068 = vmatprep.mubr.f32.mxu0 0.0
        %1069 = vmatmul.mubr.f32.gmra.mrb[0].mxu0 %v899
        %v1070 = vpop.f32.mrb[0].mxu0
        %v1071 = vadd.f32 %v1001, %v1070
        %v1072 = vpop.f32.mrb[0].mxu0
        %1073 = vdwg.mxu0
        %s1074 = scalar_lea.vmem %s4, 1
        %v1075 = vld [vmem:[%s1074] sm:$0x1]
        %v1077 = vlaneseq
        %v1078 = vshrl.u32 %v1077, 7
        %v1079 = vsub.s32 0, %v1078
        %v1080 = vrot.slane %v1075, %v1079
        %v1082 = vadd.f32 %v1071, %v1080
        %v1083 = vmax.f32 %v1082, 0.0
        %v1084 = vld [vmem:[#allocation2 + $0x8] sm:$0xff]
        %s1085 = scalar_lea.vmem [#allocation10], 128
        %v1086 = vld [vmem:[%s1085] sm:$0xff]
        %v1087 = vld [vmem:[%s1085 + $0x8] sm:$0xff]
        %v1088 = vld [vmem:[%s1085 + $0x10] sm:$0xff]
        %v1089 = vld [vmem:[%s1085 + $0x18] sm:$0xff]
        %v1090 = vld [vmem:[%s1085 + $0x20] sm:$0xff]
        %v1091 = vld [vmem:[%s1085 + $0x28] sm:$0xff]
        %v1092 = vld [vmem:[%s1085 + $0x30] sm:$0xff]
        %v1093 = vld [vmem:[%s1085 + $0x38] sm:$0xff]
        %v1094 = vld [vmem:[%s1085 + $0x40] sm:$0xff]
        %v1095 = vld [vmem:[%s1085 + $0x48] sm:$0xff]
        %v1096 = vld [vmem:[%s1085 + $0x50] sm:$0xff]
        %v1097 = vld [vmem:[%s1085 + $0x58] sm:$0xff]
        %v1098 = vld [vmem:[%s1085 + $0x60] sm:$0xff]
        %v1099 = vld [vmem:[%s1085 + $0x68] sm:$0xff]
        %v1100 = vld [vmem:[%s1085 + $0x70] sm:$0xff]
        %v1101 = vld [vmem:[%s1085 + $0x78] sm:$0xff]
        %s1102 = scalar_lea.vmem %s6, 1
        %v1103 = vld [vmem:[%s1102] sm:$0x1]
        %v1105 = vlaneseq
        %v1106 = vshrl.u32 %v1105, 7
        %v1107 = vsub.s32 0, %v1106
        %v1108 = vrot.slane %v1103, %v1107
        %1110 = vmatprep.subr.mxu0 0.0
        %1111 = vmatpush1.msra.mxu0 %v1086
        %1112 = vmatprep.subr.mxu0 0.0
        %1113 = vmatpush1.msra.mxu0 %v1087
        %1114 = vmatprep.subr.mxu0 0.0
        %1115 = vmatpush1.msra.mxu0 %v1088
        %1116 = vmatprep.subr.mxu0 0.0
        %1117 = vmatpush1.msra.mxu0 %v1089
        %1118 = vmatprep.subr.mxu0 0.0
        %1119 = vmatpush1.msra.mxu0 %v1090
        %1120 = vmatprep.subr.mxu0 0.0
        %1121 = vmatpush1.msra.mxu0 %v1091
        %1122 = vmatprep.subr.mxu0 0.0
        %1123 = vmatpush1.msra.mxu0 %v1092
        %1124 = vmatprep.subr.mxu0 0.0
        %1125 = vmatpush1.msra.mxu0 %v1093
        %1126 = vmatprep.subr.mxu0 0.0
        %1127 = vmatpush1.msra.mxu0 %v1094
        %1128 = vmatprep.subr.mxu0 0.0
        %1129 = vmatpush1.msra.mxu0 %v1095
        %1130 = vmatprep.subr.mxu0 0.0
        %1131 = vmatpush1.msra.mxu0 %v1096
        %1132 = vmatprep.subr.mxu0 0.0
        %1133 = vmatpush1.msra.mxu0 %v1097
        %1134 = vmatprep.subr.mxu0 0.0
        %1135 = vmatpush1.msra.mxu0 %v1098
        %1136 = vmatprep.subr.mxu0 0.0
        %1137 = vmatpush1.msra.mxu0 %v1099
        %1138 = vmatprep.subr.mxu0 0.0
        %1139 = vmatpush1.msra.mxu0 %v1100
        %1140 = vmatprep.subr.mxu0 0.0
        %1141 = vmatpush1.msra.mxu0 %v1101
        %1142 = vmatprep.subr.mxu0 0.0
        %1143 = vmatpush1.msra.mxu0 0.0
        %1144 = vmatprep.subr.mxu0 0.0
        %1145 = vmatpush1.msra.mxu0 0.0
        %1146 = vmatprep.subr.mxu0 0.0
        %1147 = vmatpush1.msra.mxu0 0.0
        %1148 = vmatprep.subr.mxu0 0.0
        %1149 = vmatpush1.msra.mxu0 0.0
        %1150 = vmatprep.subr.mxu0 0.0
        %1151 = vmatpush1.msra.mxu0 0.0
        %1152 = vmatprep.subr.mxu0 0.0
        %1153 = vmatpush1.msra.mxu0 0.0
        %1154 = vmatprep.subr.mxu0 0.0
        %1155 = vmatpush1.msra.mxu0 0.0
        %1156 = vmatprep.subr.mxu0 0.0
        %1157 = vmatpush1.msra.mxu0 0.0
        %1158 = vmatprep.subr.mxu0 0.0
        %1159 = vmatpush1.msra.mxu0 0.0
        %1160 = vmatprep.subr.mxu0 0.0
        %1161 = vmatpush1.msra.mxu0 0.0
        %1162 = vmatprep.subr.mxu0 0.0
        %1163 = vmatpush1.msra.mxu0 0.0
        %1164 = vmatprep.subr.mxu0 0.0
        %1165 = vmatpush1.msra.mxu0 0.0
        %1166 = vmatprep.subr.mxu0 0.0
        %1167 = vmatpush1.msra.mxu0 0.0
        %1168 = vmatprep.subr.mxu0 0.0
        %1169 = vmatpush1.msra.mxu0 0.0
        %1170 = vmatprep.subr.mxu0 0.0
        %1171 = vmatpush1.msra.mxu0 0.0
        %1172 = vmatprep.subr.mxu0 0.0
        %1173 = vmatpush1.msra.mxu0 0.0
        %1174 = vmatprep.mubr.f32.mxu0 0.0
        %1175 = vmatmul.mubr.f32.gmra.mrb[0].mxu0 %v1084
        %v1176 = vpop.f32.mrb[0].mxu0
        %v1177 = vadd.f32 %v1108, %v1176
        %v1178 = vpop.f32.mrb[0].mxu0
        %1179 = vdwg.mxu0
        %v1180 = vadd.f32 %v1083, %v1177
        %v1181 = vmax.f32 %v1180, 0.0
        %1182 = vst [vmem:[#allocation2 + $0x8] sm:$0xff] %v1181
        %v1183 = vld [vmem:[#allocation2 + $0x8] sm:$0xff]
        %1184 = vst [vmem:[%s337] sm:$0xff] %v1183
        %s1185 = sand.u32 %s186, 1
        %s1186 = scalar_lea.sflag [#allocation6], %s1185
        %s1187 = sand.u32 %s186, 1
        %s1188 = smul.addr %s1187, 8
        %s1189 = scalar_lea.vmem [#allocation12], %s1188
        // Predicated region
        $region65: #{tpu_custom_call.1} parent=47 // pred_check
          %p1190 = pneg %p196
        $region66: #{tpu_custom_call.1} parent=47 // pred_check_branch
          %1192 = sbr.rel (%p1190) target = $region68
        $region67: #{tpu_custom_call.1} parent=47 // pred_region
          %s1194 = ssub.s32 128, 128
          %1195 = vsyncadd %s1186, %s1194
          %s1196 = smul.addr %s26, 128
          %s1197 = scalar_lea.hbm %s7, %s1196
          %s1199 = sshll.u32 %s1189, 4
          %s1200 = int_to_ptr.vmem [resolvable:$true] %s1199
          %1202 = dma.vmem_to_hbm [thread:$0]  %s1200, 128, %s1197, %s1186
        $region68: #{tpu_custom_call.1} parent=47 // pred_fallthru
          _
      $region48: #{tpu_custom_call.1} parent=5 // pred_fallthru
        _
      %p1203 = scmp.le.s32.totalorder 2, %s21
      // Predicated region
      $region69: #{tpu_custom_call.1} parent=5 // pred_check
        %p1204 = pneg %p1203
      $region70: #{tpu_custom_call.1} parent=5 // pred_check_branch
        %1206 = sbr.rel (%p1204) target = $region72
      $region71: #{tpu_custom_call.1} parent=5 // pred_region
        %s1207 = ssub.s32 %s21, 2
        // Predicated region
        $region73: #{tpu_custom_call.1} parent=71 // pred_check
          %p1208 = pneg %p202
        $region74: #{tpu_custom_call.1} parent=71 // pred_check_branch
          %1210 = sbr.rel (%p1208) target = $region76
        $region75: #{tpu_custom_call.1} parent=71 // pred_region
          %s1211 = sand.u32 %s187, 1
          %s1212 = scalar_lea.sflag [#allocation6], %s1211
          %s1213 = sand.u32 %s187, 1
          %s1214 = smul.addr %s1213, 8
          %s1215 = scalar_lea.vmem [#allocation12], %s1214
          %1216 = dma.done %s1212, 128
        $region76: #{tpu_custom_call.1} parent=71 // pred_fallthru
          _
      $region72: #{tpu_custom_call.1} parent=5 // pred_fallthru
        _
    $region6: #{tpu_custom_call.1} parent=1 // loop_footer
      %s25 = sadd.s32 1, %s21
    $region7: #{tpu_custom_call.1} parent=1 // loop_footer_branch
      %20 = sbr.rel target = $region3
    $region8: #{tpu_custom_call.1} parent=1 // loop_exit
      _
    %1217 = vsyncpa [#allocation5], 1
    %s1218 = scalar_lea.sflag [#allocation5], 1
    %1219 = vsyncpa %s1218, 1
    %1220 = vsyncpa [#allocation8], 1
    %1221 = vsyncpa [#allocation11], 1
    %1222 = vsyncpa [#allocation6], 1
    %s1223 = scalar_lea.sflag [#allocation6], 1
    %1224 = vsyncpa %s1223, 1

</llo_original>
